<compile_context>
chip_gen: v7x
topology: tpu7x:2x2x1
jax: 0.10.0
libtpu: 0.0.40
codegen_flags: <defaults>
</compile_context>

<pallas_src>
import functools

import jax
import jax.numpy as jnp
from jax.experimental import pallas as pl
from jax.experimental.pallas import tpu as pltpu

HEAD_WIDTH = 128  # lane-dense fused head / combined-output width
LANE = 128
SUBLANE = 8


def _round_up(x, m):
    return ((x + m - 1) // m) * m


def _choose_batch_tile(B):
    """Auto batch tile: single step for small B (nothing to shard / hide),
    >=4 blocks of <=1024 rows for large B so multi-TC chips (v7x) split it."""
    Bp = _round_up(B, SUBLANE)
    if Bp <= 512:
        return Bp
    return max(SUBLANE, min(1024, _round_up(pl.cdiv(Bp, 4), SUBLANE)))


def _vmem_estimate_bytes(tile, k1p, fc1, fc2):
    """Rough scoped-VMEM working-set estimate for one grid step."""
    io = 2 * tile * (k1p + HEAD_WIDTH) * 4                       # x/out, 2-buffered
    wts = 2 * ((k1p * fc1 + fc1 * fc2 + fc2 * HEAD_WIDTH) * 2    # bf16 weights
               + (fc1 + fc2 + HEAD_WIDTH) * 4)                   # f32 biases
    inter = 6 * tile * max(fc1, fc2, HEAD_WIDTH) * 4             # h1/h2/head/e/...
    return io + wts + inter


def actor_critic_kernel(x_ref, w1_ref, b1_ref, w2_ref, b2_ref,
                        whv_ref, bhv_ref, out_ref, *, out_dims):
    # fc1 + relu (bf16 MXU matmul, f32 accumulate / elementwise).
    # x arrives as f32 and is cast on the VPU (saves one wrapper-side XLA op
    # and halves x HBM traffic vs. reading a pre-cast bf16 copy).
    x = x_ref[...].astype(jnp.bfloat16)
    h1 = jnp.dot(x, w1_ref[...], preferred_element_type=jnp.float32)
    h1 = jnp.maximum(h1 + b1_ref[...], 0.0)

    # fc2 + relu
    h2 = jnp.dot(h1.astype(jnp.bfloat16), w2_ref[...],
                 preferred_element_type=jnp.float32)
    h2 = jnp.maximum(h2 + b2_ref[...], 0.0)

    # fused actor+critic head: one (tb, fc2) @ (fc2, 128) matmul
    head = jnp.dot(h2.astype(jnp.bfloat16), whv_ref[...],
                   preferred_element_type=jnp.float32) + bhv_ref[...]

    lane = jax.lax.broadcasted_iota(jnp.int32, head.shape, 1)
    is_logit = lane < out_dims                       # actor logits live here
    logits = jnp.where(is_logit, head, -1e30)        # mask value col + padding

    # numerically-stable softmax over the real logit lanes only (f32 required:
    # exp(-1e30 - m) must underflow to exactly 0 for masked lanes)
    m = jnp.max(logits, axis=-1, keepdims=True)
    e = jnp.exp(logits - m)                          # masked lanes -> 0
    denom = jnp.sum(e, axis=-1, keepdims=True)
    inv = pl.reciprocal(denom, approx=True)
    inv = inv * (2.0 - denom * inv)                  # one Newton step
    probs = e * inv

    # lane-dense combined output: [probs | value | zeros]
    # (masked-lane probs are exactly 0, so no extra select needed)
    out_ref[...] = probs + jnp.where(lane == out_dims, head, 0.0)


def actor_critic_forward(x, kparams, *, batch_tile=None):
    """x: (B, input_dims) f32.  kparams: packed params from pack_params()."""
    out_dims = kparams["out_dims"]
    B, input_dims = x.shape
    assert input_dims == kparams["in_dims"], "x feature dim mismatch"

    k1p = kparams["w1"].shape[0]          # padded (lane-dense) input width
    fc1_dims = kparams["w1"].shape[1]
    fc2_dims = kparams["w2"].shape[1]

    if batch_tile is None:
        batch_tile = _choose_batch_tile(B)
    batch_tile = _round_up(batch_tile, SUBLANE)

    # Pad batch to a multiple of the batch tile and features to the padded K.
    n_blk = pl.cdiv(B, batch_tile)
    Bp = n_blk * batch_tile
    pad_rows = Bp - B
    pad_cols = k1p - input_dims
    if pad_rows or pad_cols:
        x = jnp.pad(x, ((0, pad_rows), (0, pad_cols)))

    kernel = functools.partial(actor_critic_kernel, out_dims=out_dims)

    # Only raise the scoped-VMEM limit when the working set needs it
    # (matters for large batch tiles on v5e's 16 MiB default).
    est = _vmem_estimate_bytes(batch_tile, k1p, fc1_dims, fc2_dims)
    vmem_limit = None
    if est > 12 * 1024 * 1024:
        vmem_limit = min(int(est * 1.5), 60 * 1024 * 1024)

    out = pl.pallas_call(
        kernel,
        out_shape=jax.ShapeDtypeStruct((Bp, HEAD_WIDTH), jnp.float32),
        grid_spec=pltpu.PrefetchScalarGridSpec(
            num_scalar_prefetch=0,
            grid=(n_blk,),
            in_specs=[
                pl.BlockSpec((batch_tile, k1p), lambda i: (i, 0)),
                # weights/biases: constant block index -> resident across grid
                pl.BlockSpec((k1p, fc1_dims), lambda i: (0, 0)),
                pl.BlockSpec((1, fc1_dims), lambda i: (0, 0)),
                pl.BlockSpec((fc1_dims, fc2_dims), lambda i: (0, 0)),
                pl.BlockSpec((1, fc2_dims), lambda i: (0, 0)),
                pl.BlockSpec((fc2_dims, HEAD_WIDTH), lambda i: (0, 0)),
                pl.BlockSpec((1, HEAD_WIDTH), lambda i: (0, 0)),
            ],
            out_specs=pl.BlockSpec((batch_tile, HEAD_WIDTH), lambda i: (i, 0)),
        ),
        compiler_params=pltpu.CompilerParams(
            dimension_semantics=("parallel",),
            vmem_limit_bytes=vmem_limit),
    )(x, kparams["w1"], kparams["b1"], kparams["w2"], kparams["b2"],
      kparams["whv"], kparams["bhv"])

    probs = out[:B, :out_dims]
    value = out[:B, out_dims:out_dims + 1]
    return probs, value


def init_params(key, input_dims, fc1_dims, fc2_dims, output_dims):
    """f32 params mimicking nn.Linear's U(-1/sqrt(fan_in), +1/sqrt(fan_in)).
    Weights stored transposed relative to PyTorch: (in, out)."""
    def linear(k, fan_in, fan_out):
        kw, kb = jax.random.split(k)
        bound = 1.0 / (fan_in ** 0.5)
        w = jax.random.uniform(kw, (fan_in, fan_out), jnp.float32, -bound, bound)
        b = jax.random.uniform(kb, (1, fan_out), jnp.float32, -bound, bound)
        return w, b

    k1, k2, k3, k4 = jax.random.split(key, 4)
    w1, b1 = linear(k1, input_dims, fc1_dims)
    w2, b2 = linear(k2, fc1_dims, fc2_dims)
    wp, bp = linear(k3, fc2_dims, output_dims)
    wv, bv = linear(k4, fc2_dims, 1)
    return dict(w1=w1, b1=b1, w2=w2, b2=b2, wp=wp, bp=bp, wv=wv, bv=bv)


def pack_params(p, output_dims):
    """Fuse actor/critic head weights+biases into lane-dense (.., 128) slabs,
    zero-pad w1 rows to a 128-multiple K, and cast matmul operands to bf16."""
    assert output_dims + 1 <= HEAD_WIDTH, (
        f"output_dims={output_dims} + value column must fit in the "
        f"{HEAD_WIDTH}-wide fused head")

    input_dims, fc1_dims = p["w1"].shape
    fc2_dims = p["w2"].shape[1]

    # lane-dense fc1 weight: pad K (input feature) dim to a multiple of 128
    k1p = _round_up(input_dims, LANE)
    w1 = jnp.zeros((k1p, fc1_dims), jnp.float32).at[:input_dims, :].set(p["w1"])

    # fused actor+critic head: [wp | wv | zero-pad] along the lane dim
    whv = jnp.zeros((fc2_dims, HEAD_WIDTH), jnp.float32)
    whv = whv.at[:, :output_dims].set(p["wp"])
    whv = whv.at[:, output_dims:output_dims + 1].set(p["wv"])
    bhv = jnp.zeros((1, HEAD_WIDTH), jnp.float32)
    bhv = bhv.at[:, :output_dims].set(p["bp"])
    bhv = bhv.at[:, output_dims:output_dims + 1].set(p["bv"])

    return dict(
        w1=w1.astype(jnp.bfloat16), b1=p["b1"],
        w2=p["w2"].astype(jnp.bfloat16), b2=p["b2"],
        whv=whv.astype(jnp.bfloat16), bhv=bhv,
        out_dims=output_dims, in_dims=input_dims,
    )


def ref_forward(x, p):
    """Pure-JAX reference using the same bf16-matmul / f32-accumulate recipe."""
    xb = x.astype(jnp.bfloat16)
    h1 = jax.nn.relu(jnp.dot(xb, p["w1"].astype(jnp.bfloat16),
                             preferred_element_type=jnp.float32) + p["b1"])
    h2 = jax.nn.relu(jnp.dot(h1.astype(jnp.bfloat16), p["w2"].astype(jnp.bfloat16),
                             preferred_element_type=jnp.float32) + p["b2"])
    h2b = h2.astype(jnp.bfloat16)
    logits = jnp.dot(h2b, p["wp"].astype(jnp.bfloat16),
                     preferred_element_type=jnp.float32) + p["bp"]
    value = jnp.dot(h2b, p["wv"].astype(jnp.bfloat16),
                    preferred_element_type=jnp.float32) + p["bv"]
    return jax.nn.softmax(logits, axis=-1), value


if __name__ == "__main__":
    # Module defaults fc1=fc2=256; small batch-of-environments forward.
    input_dims = 64
    fc1_dims = 256
    fc2_dims = 256
    output_dims = 8   # number of discrete actions

    key = jax.random.PRNGKey(0)
    kx, kp = jax.random.split(key)
    params = init_params(kp, input_dims, fc1_dims, fc2_dims, output_dims)
    kparams = pack_params(params, output_dims)

    # Case 1: B=256 -> auto tile picks a single 256-row grid step.
    B = 256
    x = jax.random.normal(kx, (B, input_dims), dtype=jnp.float32)
    probs, value = actor_critic_forward(x, kparams)
    jax.block_until_ready((probs, value))

    probs_ref, value_ref = ref_forward(x, params)
    assert probs.shape == (B, output_dims) and value.shape == (B, 1)
    assert jnp.allclose(probs, probs_ref, atol=2e-3, rtol=2e-3)
    assert jnp.allclose(value, value_ref, atol=2e-3, rtol=2e-3)
    assert jnp.allclose(jnp.sum(probs, axis=-1), 1.0, atol=1e-3)

    # Case 2: ragged batch + explicit small tile -> exercises batch padding
    # and the multi-block grid (parallel batch sharding path).
    B2 = 200
    x2 = jax.random.normal(jax.random.PRNGKey(1), (B2, input_dims),
                           dtype=jnp.float32)
    probs2, value2 = actor_critic_forward(x2, kparams, batch_tile=128)
    jax.block_until_ready((probs2, value2))
    probs2_ref, value2_ref = ref_forward(x2, params)
    assert probs2.shape == (B2, output_dims) and value2.shape == (B2, 1)
    assert jnp.allclose(probs2, probs2_ref, atol=2e-3, rtol=2e-3)
    assert jnp.allclose(value2, value2_ref, atol=2e-3, rtol=2e-3)
    assert jnp.allclose(jnp.sum(probs2, axis=-1), 1.0, atol=1e-3)

    print("KERNEL_OK")
</pallas_src>

<mosaic_0001>
module attributes {stable_mosaic.version = 11 : i64} {
  func.func @actor_critic_kernel(%arg0: i32, %arg1: memref<256x128xf32, #tpu.memory_space<vmem>>, %arg2: memref<128x256xbf16, #tpu.memory_space<vmem>>, %arg3: memref<1x256xf32, #tpu.memory_space<vmem>>, %arg4: memref<256x256xbf16, #tpu.memory_space<vmem>>, %arg5: memref<1x256xf32, #tpu.memory_space<vmem>>, %arg6: memref<256x128xbf16, #tpu.memory_space<vmem>>, %arg7: memref<1x128xf32, #tpu.memory_space<vmem>>, %arg8: memref<256x128xf32, #tpu.memory_space<vmem>>) attributes {dimension_semantics = [#tpu.dimension_semantics<parallel>], iteration_bounds = array<i64: 1>, scalar_prefetch = 0 : i64, scratch_operands = 0 : i64, tpu.core_type = #tpu.core_type<tc>, window_params = [{transform_indices = @transform_0, window_bounds = array<i64: 256, 128>}, {pipeline_mode = #tpu.pipeline_mode<synchronous>, transform_indices = @transform_1, window_bounds = array<i64: 128, 256>}, {pipeline_mode = #tpu.pipeline_mode<synchronous>, transform_indices = @transform_2, window_bounds = array<i64: 1, 256>}, {pipeline_mode = #tpu.pipeline_mode<synchronous>, transform_indices = @transform_3, window_bounds = array<i64: 256, 256>}, {pipeline_mode = #tpu.pipeline_mode<synchronous>, transform_indices = @transform_4, window_bounds = array<i64: 1, 256>}, {pipeline_mode = #tpu.pipeline_mode<synchronous>, transform_indices = @transform_5, window_bounds = array<i64: 256, 128>}, {pipeline_mode = #tpu.pipeline_mode<synchronous>, transform_indices = @transform_6, window_bounds = array<i64: 1, 128>}, {transform_indices = @transform_7, window_bounds = array<i64: 256, 128>}]} {
    %c0 = arith.constant 0 : index
    %c0_0 = arith.constant 0 : index
    %0 = vector.load %arg1[%c0, %c0_0] : memref<256x128xf32, #tpu.memory_space<vmem>>, vector<256x128xf32>
    %1 = arith.truncf %0 : vector<256x128xf32> to vector<256x128xbf16>
    %c0_1 = arith.constant 0 : index
    %c0_2 = arith.constant 0 : index
    %2 = vector.load %arg2[%c0_1, %c0_2] : memref<128x256xbf16, #tpu.memory_space<vmem>>, vector<128x256xbf16>
    %cst = arith.constant dense<0.000000e+00> : vector<256x256xf32>
    %3 = tpu.matmul %1, %2, %cst {dimension_numbers = #tpu.dot_dimension_numbers<[1], [0], [0], [1], [0, 0, 1, 1], [], []>} : vector<256x128xbf16>, vector<128x256xbf16>, vector<256x256xf32> -> vector<256x256xf32>
    %c0_3 = arith.constant 0 : index
    %c0_4 = arith.constant 0 : index
    %4 = vector.load %arg3[%c0_3, %c0_4] : memref<1x256xf32, #tpu.memory_space<vmem>>, vector<1x256xf32>
    %5 = vector.broadcast %4 : vector<1x256xf32> to vector<256x256xf32>
    %6 = arith.addf %3, %5 : vector<256x256xf32>
    %cst_5 = arith.constant 0.000000e+00 : f32
    %7 = vector.broadcast %cst_5 : f32 to vector<256x256xf32>
    %8 = arith.maximumf %6, %7 : vector<256x256xf32>
    %9 = arith.truncf %8 : vector<256x256xf32> to vector<256x256xbf16>
    %c0_6 = arith.constant 0 : index
    %c0_7 = arith.constant 0 : index
    %10 = vector.load %arg4[%c0_6, %c0_7] : memref<256x256xbf16, #tpu.memory_space<vmem>>, vector<256x256xbf16>
    %cst_8 = arith.constant dense<0.000000e+00> : vector<256x256xf32>
    %11 = tpu.matmul %9, %10, %cst_8 {dimension_numbers = #tpu.dot_dimension_numbers<[1], [0], [0], [1], [0, 0, 1, 1], [], []>} : vector<256x256xbf16>, vector<256x256xbf16>, vector<256x256xf32> -> vector<256x256xf32>
    %c0_9 = arith.constant 0 : index
    %c0_10 = arith.constant 0 : index
    %12 = vector.load %arg5[%c0_9, %c0_10] : memref<1x256xf32, #tpu.memory_space<vmem>>, vector<1x256xf32>
    %13 = vector.broadcast %12 : vector<1x256xf32> to vector<256x256xf32>
    %14 = arith.addf %11, %13 : vector<256x256xf32>
    %cst_11 = arith.constant 0.000000e+00 : f32
    %15 = vector.broadcast %cst_11 : f32 to vector<256x256xf32>
    %16 = arith.maximumf %14, %15 : vector<256x256xf32>
    %17 = arith.truncf %16 : vector<256x256xf32> to vector<256x256xbf16>
    %c0_12 = arith.constant 0 : index
    %c0_13 = arith.constant 0 : index
    %18 = vector.load %arg6[%c0_12, %c0_13] : memref<256x128xbf16, #tpu.memory_space<vmem>>, vector<256x128xbf16>
    %cst_14 = arith.constant dense<0.000000e+00> : vector<256x128xf32>
    %19 = tpu.matmul %17, %18, %cst_14 {dimension_numbers = #tpu.dot_dimension_numbers<[1], [0], [0], [1], [0, 0, 1, 1], [], []>} : vector<256x256xbf16>, vector<256x128xbf16>, vector<256x128xf32> -> vector<256x128xf32>
    %c0_15 = arith.constant 0 : index
    %c0_16 = arith.constant 0 : index
    %20 = vector.load %arg7[%c0_15, %c0_16] : memref<1x128xf32, #tpu.memory_space<vmem>>, vector<1x128xf32>
    %21 = vector.broadcast %20 : vector<1x128xf32> to vector<256x128xf32>
    %22 = arith.addf %19, %21 : vector<256x128xf32>
    %23 = tpu.iota {dimensions = array<i32: 1>} : vector<256x128xi32>
    %c8_i32 = arith.constant 8 : i32
    %24 = vector.broadcast %c8_i32 : i32 to vector<256x128xi32>
    %25 = arith.cmpi slt, %23, %24 : vector<256x128xi32>
    %cst_17 = arith.constant -1.000000e+30 : f32
    %26 = vector.broadcast %cst_17 : f32 to vector<256x128xf32>
    %27 = arith.select %25, %22, %26 : vector<256x128xi1>, vector<256x128xf32>
    %cst_18 = arith.constant dense<0xFF800000> : vector<256xf32>
    %28 = vector.multi_reduction <maximumf>, %27, %cst_18 [1] : vector<256x128xf32> to vector<256xf32>
    %29 = vector.shape_cast %28 : vector<256xf32> to vector<256x1xf32>
    %30 = vector.broadcast %29 : vector<256x1xf32> to vector<256x128xf32>
    %31 = arith.subf %27, %30 : vector<256x128xf32>
    %32 = math.exp %31 : vector<256x128xf32>
    %cst_19 = arith.constant dense<0.000000e+00> : vector<256xf32>
    %33 = vector.multi_reduction <add>, %32, %cst_19 [1] : vector<256x128xf32> to vector<256xf32>
    %34 = vector.shape_cast %33 : vector<256xf32> to vector<256x1xf32>
    %35 = tpu.reciprocal %34 {approx = true} : vector<256x1xf32> -> vector<256x1xf32>
    %36 = arith.mulf %34, %35 : vector<256x1xf32>
    %cst_20 = arith.constant 2.000000e+00 : f32
    %37 = vector.broadcast %cst_20 : f32 to vector<256x1xf32>
    %38 = arith.subf %37, %36 : vector<256x1xf32>
    %39 = arith.mulf %35, %38 : vector<256x1xf32>
    %40 = vector.broadcast %39 : vector<256x1xf32> to vector<256x128xf32>
    %41 = arith.mulf %32, %40 : vector<256x128xf32>
    %c8_i32_21 = arith.constant 8 : i32
    %42 = vector.broadcast %c8_i32_21 : i32 to vector<256x128xi32>
    %43 = arith.cmpi eq, %23, %42 : vector<256x128xi32>
    %cst_22 = arith.constant 0.000000e+00 : f32
    %44 = vector.broadcast %cst_22 : f32 to vector<256x128xf32>
    %45 = arith.select %43, %22, %44 : vector<256x128xi1>, vector<256x128xf32>
    %46 = arith.addf %41, %45 : vector<256x128xf32>
    %c0_23 = arith.constant 0 : index
    %c0_24 = arith.constant 0 : index
    %47 = vector.load %arg8[%c0_23, %c0_24] : memref<256x128xf32, #tpu.memory_space<vmem>>, vector<256x128xf32>
    tpu.vector_store %arg8[%c0_23, %c0_24], %46 {strides = array<i32>} : memref<256x128xf32, #tpu.memory_space<vmem>>, vector<256x128xf32>,
    return
  }
  func.func @transform_0(%arg0: i32) -> (i32, i32) {
    %c0_i32 = arith.constant 0 : i32
    %c0_i32_0 = arith.constant 0 : i32
    return %arg0, %c0_i32 : i32, i32
  }
  func.func @transform_1(%arg0: i32) -> (i32, i32) {
    %c0_i32 = arith.constant 0 : i32
    %c0_i32_0 = arith.constant 0 : i32
    %c0_i32_1 = arith.constant 0 : i32
    return %c0_i32, %c0_i32_0 : i32, i32
  }
  func.func @transform_2(%arg0: i32) -> (i32, i32) {
    %c0_i32 = arith.constant 0 : i32
    %c0_i32_0 = arith.constant 0 : i32
    %c0_i32_1 = arith.constant 0 : i32
    return %c0_i32, %c0_i32_0 : i32, i32
  }
  func.func @transform_3(%arg0: i32) -> (i32, i32) {
    %c0_i32 = arith.constant 0 : i32
    %c0_i32_0 = arith.constant 0 : i32
    %c0_i32_1 = arith.constant 0 : i32
    return %c0_i32, %c0_i32_0 : i32, i32
  }
  func.func @transform_4(%arg0: i32) -> (i32, i32) {
    %c0_i32 = arith.constant 0 : i32
    %c0_i32_0 = arith.constant 0 : i32
    %c0_i32_1 = arith.constant 0 : i32
    return %c0_i32, %c0_i32_0 : i32, i32
  }
  func.func @transform_5(%arg0: i32) -> (i32, i32) {
    %c0_i32 = arith.constant 0 : i32
    %c0_i32_0 = arith.constant 0 : i32
    %c0_i32_1 = arith.constant 0 : i32
    return %c0_i32, %c0_i32_0 : i32, i32
  }
  func.func @transform_6(%arg0: i32) -> (i32, i32) {
    %c0_i32 = arith.constant 0 : i32
    %c0_i32_0 = arith.constant 0 : i32
    %c0_i32_1 = arith.constant 0 : i32
    return %c0_i32, %c0_i32_0 : i32, i32
  }
  func.func @transform_7(%arg0: i32) -> (i32, i32) {
    %c0_i32 = arith.constant 0 : i32
    %c0_i32_0 = arith.constant 0 : i32
    return %arg0, %c0_i32 : i32, i32
  }
}

</mosaic_0001>

<llo_original>
// kernel: tpu_custom_call.1
$region0: #{tpu_custom_call.1}
  #allocation0 [shape = 'u32[]', space=smem, size = 0x4, offset = 0x4, fixed_abs, tag = 'smem constant byte address 0x4 - core index']
  #allocation1 [shape = 'u32[144,128]{1,0:T(1,128)}', space=vmem, size = 0x12000, scoped, tag = 'internal scratch']
  %s0 = inlined_call_operand.hbm [shape: f32[256,128], index: 0, kind: input, shape index: {}]
  %s1 = inlined_call_operand.hbm [shape: bf16[128,256], index: 1, kind: input, shape index: {}]
  %s2 = inlined_call_operand.vmem [shape: f32[1,256], index: 2, kind: input, shape index: {}]
  %s3 = inlined_call_operand.hbm [shape: bf16[256,256], index: 3, kind: input, shape index: {}]
  %s4 = inlined_call_operand.vmem [shape: f32[1,256], index: 4, kind: input, shape index: {}]
  %s5 = inlined_call_operand.hbm [shape: bf16[256,128], index: 5, kind: input, shape index: {}]
  %s6 = inlined_call_operand.vmem [shape: f32[1,128], index: 6, kind: input, shape index: {}]
  %s7 = inlined_call_operand.hbm [shape: f32[256,128], index: 7, kind: output, shape index: {}]
  %s8 = sld [smem:[#allocation0]]
  $region54: #{tpu_custom_call.1} parent=0
    _
  %s10 = ssub.s32 1, %s8
  %s11 = scalar_select 0, %s10, %s8
  $region1: #{tpu_custom_call.1} parent=0
    #allocation2 [shape = 'u8[131072]{0}', space=vmem, size = 0x20000, scoped, tag = 'input window, operand 0, single buffered']
    #allocation3 [shape = 's32[1]{0}', space=sflag, size = 0x4, scoped, tag = 'scoped memory for tpu_custom_call.1']
    #allocation4 [shape = 's32[1]{0}', space=sflag, size = 0x4, scoped, tag = 'scoped memory for tpu_custom_call.1']
    #allocation5 [shape = 'u8[65536]{0}', space=vmem, size = 0x10000, scoped, tag = 'input window, operand 1, single buffered']
    #allocation6 [shape = 's32[1]{0}', space=sflag, size = 0x4, scoped, tag = 'scoped memory for tpu_custom_call.1']
    #allocation7 [shape = 'u8[131072]{0}', space=vmem, size = 0x20000, scoped, tag = 'input window, operand 3, single buffered']
    #allocation8 [shape = 'u8[65536]{0}', space=vmem, size = 0x10000, scoped, tag = 'input window, operand 5, single buffered']
    #allocation9 [shape = 's32[1]{0}', space=sflag, size = 0x4, scoped, tag = 'scoped memory for tpu_custom_call.1']
    #allocation10 [shape = 'u8[131072]{0}', space=vmem, size = 0x20000, scoped, tag = 'output window, operand 0, single buffered']
    %12 = vsyncpa [#allocation3], 0
    %13 = vsyncpa [#allocation6], 0
    %14 = vsyncpa [#allocation9], 0
    %15 = vsyncpa [#allocation4], 0
    // Predicated region
    $region2: #{tpu_custom_call.1} parent=1 // pred_check
      _
    $region3: #{tpu_custom_call.1} parent=1 // pred_check_branch
      %17 = sbr.rel (0) target = $region5
    $region4: #{tpu_custom_call.1} parent=1 // pred_region
      %s19 = ssub.s32 4096, 4096
      %20 = vsyncadd [#allocation3], %s19
      %s21 = sshll.u32 [#allocation2], 4
      %s22 = int_to_ptr.vmem [resolvable:$true] %s21
      %27 = dma.hbm_to_vmem [thread:$0]  %s0, 4096, %s22, [#allocation3], 128, 128, 8
    $region5: #{tpu_custom_call.1} parent=1 // pred_fallthru
      _
    // Predicated region
    $region6: #{tpu_custom_call.1} parent=1 // pred_check
      _
    $region7: #{tpu_custom_call.1} parent=1 // pred_check_branch
      %29 = sbr.rel (0) target = $region9
    $region8: #{tpu_custom_call.1} parent=1 // pred_region
      %s31 = ssub.s32 2048, 2048
      %32 = vsyncadd [#allocation6], %s31
      %s33 = sshll.u32 [#allocation5], 4
      %s34 = int_to_ptr.vmem [resolvable:$true] %s33
      %39 = dma.hbm_to_vmem [thread:$0]  %s1, 2048, %s34, [#allocation6], 128, 128, 8
    $region9: #{tpu_custom_call.1} parent=1 // pred_fallthru
      _
    // Predicated region
    $region10: #{tpu_custom_call.1} parent=1 // pred_check
      _
    $region11: #{tpu_custom_call.1} parent=1 // pred_check_branch
      %41 = sbr.rel (0) target = $region13
    $region12: #{tpu_custom_call.1} parent=1 // pred_region
      _
    $region13: #{tpu_custom_call.1} parent=1 // pred_fallthru
      _
    // Predicated region
    $region14: #{tpu_custom_call.1} parent=1 // pred_check
      _
    $region15: #{tpu_custom_call.1} parent=1 // pred_check_branch
      %43 = sbr.rel (0) target = $region17
    $region16: #{tpu_custom_call.1} parent=1 // pred_region
      %s45 = ssub.s32 4096, 4096
      %46 = vsyncadd [#allocation6], %s45
      %s47 = sshll.u32 [#allocation7], 4
      %s48 = int_to_ptr.vmem [resolvable:$true] %s47
      %53 = dma.hbm_to_vmem [thread:$0]  %s3, 4096, %s48, [#allocation6], 128, 128, 8
    $region17: #{tpu_custom_call.1} parent=1 // pred_fallthru
      _
    // Predicated region
    $region18: #{tpu_custom_call.1} parent=1 // pred_check
      _
    $region19: #{tpu_custom_call.1} parent=1 // pred_check_branch
      %55 = sbr.rel (0) target = $region21
    $region20: #{tpu_custom_call.1} parent=1 // pred_region
      _
    $region21: #{tpu_custom_call.1} parent=1 // pred_fallthru
      _
    // Predicated region
    $region22: #{tpu_custom_call.1} parent=1 // pred_check
      _
    $region23: #{tpu_custom_call.1} parent=1 // pred_check_branch
      %57 = sbr.rel (0) target = $region25
    $region24: #{tpu_custom_call.1} parent=1 // pred_region
      %s59 = ssub.s32 2048, 2048
      %60 = vsyncadd [#allocation9], %s59
      %s61 = sshll.u32 [#allocation8], 4
      %s62 = int_to_ptr.vmem [resolvable:$true] %s61
      %67 = dma.hbm_to_vmem [thread:$0]  %s5, 2048, %s62, [#allocation9], 64, 64, 4
    $region25: #{tpu_custom_call.1} parent=1 // pred_fallthru
      _
    // Predicated region
    $region26: #{tpu_custom_call.1} parent=1 // pred_check
      _
    $region27: #{tpu_custom_call.1} parent=1 // pred_check_branch
      %69 = sbr.rel (0) target = $region29
    $region28: #{tpu_custom_call.1} parent=1 // pred_region
      _
    $region29: #{tpu_custom_call.1} parent=1 // pred_fallthru
      _
    // Predicated region
    $region30: #{tpu_custom_call.1} parent=1 // pred_check
      _
    $region31: #{tpu_custom_call.1} parent=1 // pred_check_branch
      %71 = sbr.rel (0) target = $region33
    $region32: #{tpu_custom_call.1} parent=1 // pred_region
      %72 = dma.done [#allocation3], 4096
    $region33: #{tpu_custom_call.1} parent=1 // pred_fallthru
      _
    // Predicated region
    $region34: #{tpu_custom_call.1} parent=1 // pred_check
      _
    $region35: #{tpu_custom_call.1} parent=1 // pred_check_branch
      %74 = sbr.rel (0) target = $region37
    $region36: #{tpu_custom_call.1} parent=1 // pred_region
      %75 = dma.done [#allocation6], 2048
    $region37: #{tpu_custom_call.1} parent=1 // pred_fallthru
      _
    // Predicated region
    $region38: #{tpu_custom_call.1} parent=1 // pred_check
      _
    $region39: #{tpu_custom_call.1} parent=1 // pred_check_branch
      %77 = sbr.rel (0) target = $region41
    $region40: #{tpu_custom_call.1} parent=1 // pred_region
      %78 = dma.done [#allocation6], 4096
    $region41: #{tpu_custom_call.1} parent=1 // pred_fallthru
      _
    // Predicated region
    $region42: #{tpu_custom_call.1} parent=1 // pred_check
      _
    $region43: #{tpu_custom_call.1} parent=1 // pred_check_branch
      %80 = sbr.rel (0) target = $region45
    $region44: #{tpu_custom_call.1} parent=1 // pred_region
      %81 = dma.done [#allocation9], 2048
    $region45: #{tpu_custom_call.1} parent=1 // pred_fallthru
      _
    %v83 = vld [vmem:[#allocation2] sm:$0xff]
    %v84 = vld [vmem:[#allocation2 + $0x8] sm:$0xff]
    %v85 = vld [vmem:[#allocation2 + $0x10] sm:$0xff]
    %v86 = vld [vmem:[#allocation2 + $0x18] sm:$0xff]
    %v87 = vld [vmem:[#allocation2 + $0x20] sm:$0xff]
    %v88 = vld [vmem:[#allocation2 + $0x28] sm:$0xff]
    %v89 = vld [vmem:[#allocation2 + $0x30] sm:$0xff]
    %v90 = vld [vmem:[#allocation2 + $0x38] sm:$0xff]
    %v91 = vld [vmem:[#allocation2 + $0x40] sm:$0xff]
    %v92 = vld [vmem:[#allocation2 + $0x48] sm:$0xff]
    %v93 = vld [vmem:[#allocation2 + $0x50] sm:$0xff]
    %v94 = vld [vmem:[#allocation2 + $0x58] sm:$0xff]
    %v95 = vld [vmem:[#allocation2 + $0x60] sm:$0xff]
    %v96 = vld [vmem:[#allocation2 + $0x68] sm:$0xff]
    %v97 = vld [vmem:[#allocation2 + $0x70] sm:$0xff]
    %v98 = vld [vmem:[#allocation2 + $0x78] sm:$0xff]
    %v99 = vld [vmem:[#allocation2 + $0x80] sm:$0xff]
    %v100 = vld [vmem:[#allocation2 + $0x88] sm:$0xff]
    %v101 = vld [vmem:[#allocation2 + $0x90] sm:$0xff]
    %v102 = vld [vmem:[#allocation2 + $0x98] sm:$0xff]
    %v103 = vld [vmem:[#allocation2 + $0xa0] sm:$0xff]
    %v104 = vld [vmem:[#allocation2 + $0xa8] sm:$0xff]
    %v105 = vld [vmem:[#allocation2 + $0xb0] sm:$0xff]
    %v106 = vld [vmem:[#allocation2 + $0xb8] sm:$0xff]
    %v107 = vld [vmem:[#allocation2 + $0xc0] sm:$0xff]
    %v108 = vld [vmem:[#allocation2 + $0xc8] sm:$0xff]
    %v109 = vld [vmem:[#allocation2 + $0xd0] sm:$0xff]
    %v110 = vld [vmem:[#allocation2 + $0xd8] sm:$0xff]
    %v111 = vld [vmem:[#allocation2 + $0xe0] sm:$0xff]
    %v112 = vld [vmem:[#allocation2 + $0xe8] sm:$0xff]
    %v113 = vld [vmem:[#allocation2 + $0xf0] sm:$0xff]
    %v114 = vld [vmem:[#allocation2 + $0xf8] sm:$0xff]
    %v115 = vpack.c.bf16 %v84, %v83
    %v116 = vpack.c.bf16 %v86, %v85
    %v117 = vpack.c.bf16 %v88, %v87
    %v118 = vpack.c.bf16 %v90, %v89
    %v119 = vpack.c.bf16 %v92, %v91
    %v120 = vpack.c.bf16 %v94, %v93
    %v121 = vpack.c.bf16 %v96, %v95
    %v122 = vpack.c.bf16 %v98, %v97
    %v123 = vpack.c.bf16 %v100, %v99
    %v124 = vpack.c.bf16 %v102, %v101
    %v125 = vpack.c.bf16 %v104, %v103
    %v126 = vpack.c.bf16 %v106, %v105
    %v127 = vpack.c.bf16 %v108, %v107
    %v128 = vpack.c.bf16 %v110, %v109
    %v129 = vpack.c.bf16 %v112, %v111
    %v130 = vpack.c.bf16 %v114, %v113
    %v131 = vld [vmem:[#allocation5] sm:$0xff]
    %v132 = vld [vmem:[#allocation5 + $0x8] sm:$0xff]
    %v133 = vld [vmem:[#allocation5 + $0x10] sm:$0xff]
    %v134 = vld [vmem:[#allocation5 + $0x18] sm:$0xff]
    %v135 = vld [vmem:[#allocation5 + $0x20] sm:$0xff]
    %v136 = vld [vmem:[#allocation5 + $0x28] sm:$0xff]
    %v137 = vld [vmem:[#allocation5 + $0x30] sm:$0xff]
    %v138 = vld [vmem:[#allocation5 + $0x38] sm:$0xff]
    %v139 = vld [vmem:[#allocation5 + $0x40] sm:$0xff]
    %v140 = vld [vmem:[#allocation5 + $0x48] sm:$0xff]
    %v141 = vld [vmem:[#allocation5 + $0x50] sm:$0xff]
    %v142 = vld [vmem:[#allocation5 + $0x58] sm:$0xff]
    %v143 = vld [vmem:[#allocation5 + $0x60] sm:$0xff]
    %v144 = vld [vmem:[#allocation5 + $0x68] sm:$0xff]
    %v145 = vld [vmem:[#allocation5 + $0x70] sm:$0xff]
    %v146 = vld [vmem:[#allocation5 + $0x78] sm:$0xff]
    %v147 = vld [vmem:[%s2] sm:$0x3]
    %v149 = vlaneseq
    %v150 = vshrl.u32 %v149, 7
    %v151 = vsub.s32 0, %v150
    %v152 = vrot.slane %v147, %v151
    %v153 = vlaneseq
    %v154 = vshrl.u32 %v153, 7
    %v155 = vsub.s32 1, %v154
    %v156 = vrot.slane %v147, %v155
    %v175 = vunpack.c.l.b16 %v131
    %v176 = vunpack.c.h.b16 %v131
    %v177 = vunpack.c.l.b16 %v132
    %v178 = vunpack.c.h.b16 %v132
    %v179 = vunpack.c.l.b16 %v133
    %v180 = vunpack.c.h.b16 %v133
    %v181 = vunpack.c.l.b16 %v134
    %v182 = vunpack.c.h.b16 %v134
    %v183 = vunpack.c.l.b16 %v135
    %v184 = vunpack.c.h.b16 %v135
    %v185 = vunpack.c.l.b16 %v136
    %v186 = vunpack.c.h.b16 %v136
    %v187 = vunpack.c.l.b16 %v137
    %v188 = vunpack.c.h.b16 %v137
    %v189 = vunpack.c.l.b16 %v138
    %v190 = vunpack.c.h.b16 %v138
    %v191 = vunpack.c.l.b16 %v139
    %v192 = vunpack.c.h.b16 %v139
    %v193 = vunpack.c.l.b16 %v140
    %v194 = vunpack.c.h.b16 %v140
    %v195 = vunpack.c.l.b16 %v141
    %v196 = vunpack.c.h.b16 %v141
    %v197 = vunpack.c.l.b16 %v142
    %v198 = vunpack.c.h.b16 %v142
    %v199 = vunpack.c.l.b16 %v143
    %v200 = vunpack.c.h.b16 %v143
    %v201 = vunpack.c.l.b16 %v144
    %v202 = vunpack.c.h.b16 %v144
    %v203 = vunpack.c.l.b16 %v145
    %v204 = vunpack.c.h.b16 %v145
    %v205 = vunpack.c.l.b16 %v146
    %v206 = vunpack.c.h.b16 %v146
    %v207 = vpack.c.b16 %v177, %v175
    %v208 = vpack.c.b16 %v178, %v176
    %v209 = vpack.c.b16 %v181, %v179
    %v210 = vpack.c.b16 %v182, %v180
    %v211 = vpack.c.b16 %v185, %v183
    %v212 = vpack.c.b16 %v186, %v184
    %v213 = vpack.c.b16 %v189, %v187
    %v214 = vpack.c.b16 %v190, %v188
    %v215 = vpack.c.b16 %v193, %v191
    %v216 = vpack.c.b16 %v194, %v192
    %v217 = vpack.c.b16 %v197, %v195
    %v218 = vpack.c.b16 %v198, %v196
    %v219 = vpack.c.b16 %v201, %v199
    %v220 = vpack.c.b16 %v202, %v200
    %v221 = vpack.c.b16 %v205, %v203
    %v222 = vpack.c.b16 %v206, %v204
    %239 = vmatprep.subr.bf16.mxu0 %v208
    %240 = vmatpush1.bf16.msra.mxu0 %v207
    %241 = vmatprep.subr.bf16.mxu0 %v210
    %242 = vmatpush1.bf16.msra.mxu0 %v209
    %243 = vmatprep.subr.bf16.mxu0 %v212
    %244 = vmatpush1.bf16.msra.mxu0 %v211
    %245 = vmatprep.subr.bf16.mxu0 %v214
    %246 = vmatpush1.bf16.msra.mxu0 %v213
    %247 = vmatprep.subr.bf16.mxu0 %v216
    %248 = vmatpush1.bf16.msra.mxu0 %v215
    %249 = vmatprep.subr.bf16.mxu0 %v218
    %250 = vmatpush1.bf16.msra.mxu0 %v217
    %251 = vmatprep.subr.bf16.mxu0 %v220
    %252 = vmatpush1.bf16.msra.mxu0 %v219
    %253 = vmatprep.subr.bf16.mxu0 %v222
    %254 = vmatpush1.bf16.msra.mxu0 %v221
    %255 = vmatprep.subr.bf16.mxu0 0
    %256 = vmatpush1.bf16.msra.mxu0 0
    %257 = vmatprep.subr.bf16.mxu0 0
    %258 = vmatpush1.bf16.msra.mxu0 0
    %259 = vmatprep.subr.bf16.mxu0 0
    %260 = vmatpush1.bf16.msra.mxu0 0
    %261 = vmatprep.subr.bf16.mxu0 0
    %262 = vmatpush1.bf16.msra.mxu0 0
    %263 = vmatprep.subr.bf16.mxu0 0
    %264 = vmatpush1.bf16.msra.mxu0 0
    %265 = vmatprep.subr.bf16.mxu0 0
    %266 = vmatpush1.bf16.msra.mxu0 0
    %267 = vmatprep.subr.bf16.mxu0 0
    %268 = vmatpush1.bf16.msra.mxu0 0
    %269 = vmatprep.subr.bf16.mxu0 0
    %270 = vmatpush1.bf16.msra.mxu0 0
    %271 = vmatprep.mubr.bf16.mxu0 0
    %272 = vmatmul.mubr.bf16.gmra.mrb[0].mxu0 %v115
    %v273 = vpop.f32.mrb[0].mxu0
    %v274 = vadd.f32 %v152, %v273
    %v275 = vpop.f32.mrb[0].mxu0
    %v276 = vadd.f32 %v156, %v275
    %v277 = vpop.f32.mrb[0].mxu0
    %v278 = vadd.f32 %v152, %v277
    %v279 = vpop.f32.mrb[0].mxu0
    %v280 = vadd.f32 %v156, %v279
    %281 = vmatprep.mubr.bf16.mxu0 0
    %282 = vmatmul.mubr.bf16.gmra.mrb[0].mxu0 %v116
    %v283 = vpop.f32.mrb[0].mxu0
    %v284 = vadd.f32 %v152, %v283
    %v285 = vpop.f32.mrb[0].mxu0
    %v286 = vadd.f32 %v156, %v285
    %v287 = vpop.f32.mrb[0].mxu0
    %v288 = vadd.f32 %v152, %v287
    %v289 = vpop.f32.mrb[0].mxu0
    %v290 = vadd.f32 %v156, %v289
    %291 = vmatprep.mubr.bf16.mxu0 0
    %292 = vmatmul.mubr.bf16.gmra.mrb[0].mxu0 %v117
    %v293 = vpop.f32.mrb[0].mxu0
    %v294 = vadd.f32 %v152, %v293
    %v295 = vpop.f32.mrb[0].mxu0
    %v296 = vadd.f32 %v156, %v295
    %v297 = vpop.f32.mrb[0].mxu0
    %v298 = vadd.f32 %v152, %v297
    %v299 = vpop.f32.mrb[0].mxu0
    %v300 = vadd.f32 %v156, %v299
    %301 = vmatprep.mubr.bf16.mxu0 0
    %302 = vmatmul.mubr.bf16.gmra.mrb[0].mxu0 %v118
    %v303 = vpop.f32.mrb[0].mxu0
    %v304 = vadd.f32 %v152, %v303
    %v305 = vpop.f32.mrb[0].mxu0
    %v306 = vadd.f32 %v156, %v305
    %v307 = vpop.f32.mrb[0].mxu0
    %v308 = vadd.f32 %v152, %v307
    %v309 = vpop.f32.mrb[0].mxu0
    %v310 = vadd.f32 %v156, %v309
    %311 = vmatprep.mubr.bf16.mxu0 0
    %312 = vmatmul.mubr.bf16.gmra.mrb[0].mxu0 %v119
    %v313 = vpop.f32.mrb[0].mxu0
    %v314 = vadd.f32 %v152, %v313
    %v315 = vpop.f32.mrb[0].mxu0
    %v316 = vadd.f32 %v156, %v315
    %v317 = vpop.f32.mrb[0].mxu0
    %v318 = vadd.f32 %v152, %v317
    %v319 = vpop.f32.mrb[0].mxu0
    %v320 = vadd.f32 %v156, %v319
    %321 = vmatprep.mubr.bf16.mxu0 0
    %322 = vmatmul.mubr.bf16.gmra.mrb[0].mxu0 %v120
    %v323 = vpop.f32.mrb[0].mxu0
    %v324 = vadd.f32 %v152, %v323
    %v325 = vpop.f32.mrb[0].mxu0
    %v326 = vadd.f32 %v156, %v325
    %v327 = vpop.f32.mrb[0].mxu0
    %v328 = vadd.f32 %v152, %v327
    %v329 = vpop.f32.mrb[0].mxu0
    %v330 = vadd.f32 %v156, %v329
    %331 = vmatprep.mubr.bf16.mxu0 0
    %332 = vmatmul.mubr.bf16.gmra.mrb[0].mxu0 %v121
    %v333 = vpop.f32.mrb[0].mxu0
    %v334 = vadd.f32 %v152, %v333
    %v335 = vpop.f32.mrb[0].mxu0
    %v336 = vadd.f32 %v156, %v335
    %v337 = vpop.f32.mrb[0].mxu0
    %v338 = vadd.f32 %v152, %v337
    %v339 = vpop.f32.mrb[0].mxu0
    %v340 = vadd.f32 %v156, %v339
    %341 = vmatprep.mubr.bf16.mxu0 0
    %342 = vmatmul.mubr.bf16.gmra.mrb[0].mxu0 %v122
    %v343 = vpop.f32.mrb[0].mxu0
    %v344 = vadd.f32 %v152, %v343
    %v345 = vpop.f32.mrb[0].mxu0
    %v346 = vadd.f32 %v156, %v345
    %v347 = vpop.f32.mrb[0].mxu0
    %v348 = vadd.f32 %v152, %v347
    %v349 = vpop.f32.mrb[0].mxu0
    %v350 = vadd.f32 %v156, %v349
    %351 = vmatprep.mubr.bf16.mxu0 0
    %352 = vmatmul.mubr.bf16.gmra.mrb[0].mxu0 %v123
    %v353 = vpop.f32.mrb[0].mxu0
    %v354 = vadd.f32 %v152, %v353
    %v355 = vpop.f32.mrb[0].mxu0
    %v356 = vadd.f32 %v156, %v355
    %v357 = vpop.f32.mrb[0].mxu0
    %v358 = vadd.f32 %v152, %v357
    %v359 = vpop.f32.mrb[0].mxu0
    %v360 = vadd.f32 %v156, %v359
    %361 = vmatprep.mubr.bf16.mxu0 0
    %362 = vmatmul.mubr.bf16.gmra.mrb[0].mxu0 %v124
    %v363 = vpop.f32.mrb[0].mxu0
    %v364 = vadd.f32 %v152, %v363
    %v365 = vpop.f32.mrb[0].mxu0
    %v366 = vadd.f32 %v156, %v365
    %v367 = vpop.f32.mrb[0].mxu0
    %v368 = vadd.f32 %v152, %v367
    %v369 = vpop.f32.mrb[0].mxu0
    %v370 = vadd.f32 %v156, %v369
    %371 = vmatprep.mubr.bf16.mxu0 0
    %372 = vmatmul.mubr.bf16.gmra.mrb[0].mxu0 %v125
    %v373 = vpop.f32.mrb[0].mxu0
    %v374 = vadd.f32 %v152, %v373
    %v375 = vpop.f32.mrb[0].mxu0
    %v376 = vadd.f32 %v156, %v375
    %v377 = vpop.f32.mrb[0].mxu0
    %v378 = vadd.f32 %v152, %v377
    %v379 = vpop.f32.mrb[0].mxu0
    %v380 = vadd.f32 %v156, %v379
    %381 = vmatprep.mubr.bf16.mxu0 0
    %382 = vmatmul.mubr.bf16.gmra.mrb[0].mxu0 %v126
    %v383 = vpop.f32.mrb[0].mxu0
    %v384 = vadd.f32 %v152, %v383
    %v385 = vpop.f32.mrb[0].mxu0
    %v386 = vadd.f32 %v156, %v385
    %v387 = vpop.f32.mrb[0].mxu0
    %v388 = vadd.f32 %v152, %v387
    %v389 = vpop.f32.mrb[0].mxu0
    %v390 = vadd.f32 %v156, %v389
    %391 = vmatprep.mubr.bf16.mxu0 0
    %392 = vmatmul.mubr.bf16.gmra.mrb[0].mxu0 %v127
    %v393 = vpop.f32.mrb[0].mxu0
    %v394 = vadd.f32 %v152, %v393
    %v395 = vpop.f32.mrb[0].mxu0
    %v396 = vadd.f32 %v156, %v395
    %v397 = vpop.f32.mrb[0].mxu0
    %v398 = vadd.f32 %v152, %v397
    %v399 = vpop.f32.mrb[0].mxu0
    %v400 = vadd.f32 %v156, %v399
    %401 = vmatprep.mubr.bf16.mxu0 0
    %402 = vmatmul.mubr.bf16.gmra.mrb[0].mxu0 %v128
    %v403 = vpop.f32.mrb[0].mxu0
    %v404 = vadd.f32 %v152, %v403
    %v405 = vpop.f32.mrb[0].mxu0
    %v406 = vadd.f32 %v156, %v405
    %v407 = vpop.f32.mrb[0].mxu0
    %v408 = vadd.f32 %v152, %v407
    %v409 = vpop.f32.mrb[0].mxu0
    %v410 = vadd.f32 %v156, %v409
    %411 = vmatprep.mubr.bf16.mxu0 0
    %412 = vmatmul.mubr.bf16.gmra.mrb[0].mxu0 %v129
    %v413 = vpop.f32.mrb[0].mxu0
    %v414 = vadd.f32 %v152, %v413
    %v415 = vpop.f32.mrb[0].mxu0
    %v416 = vadd.f32 %v156, %v415
    %v417 = vpop.f32.mrb[0].mxu0
    %v418 = vadd.f32 %v152, %v417
    %v419 = vpop.f32.mrb[0].mxu0
    %v420 = vadd.f32 %v156, %v419
    %421 = vmatprep.mubr.bf16.mxu0 0
    %422 = vmatmul.mubr.bf16.gmra.mrb[0].mxu0 %v130
    %v423 = vpop.f32.mrb[0].mxu0
    %v424 = vadd.f32 %v152, %v423
    %v425 = vpop.f32.mrb[0].mxu0
    %v426 = vadd.f32 %v156, %v425
    %v427 = vpop.f32.mrb[0].mxu0
    %v428 = vadd.f32 %v152, %v427
    %v429 = vpop.f32.mrb[0].mxu0
    %v430 = vadd.f32 %v156, %v429
    %431 = vdwg.mxu0
    %v432 = vmax.f32 %v274, 0.0
    %v433 = vmax.f32 %v276, 0.0
    %v434 = vmax.f32 %v278, 0.0
    %v435 = vmax.f32 %v280, 0.0
    %v436 = vmax.f32 %v284, 0.0
    %v437 = vmax.f32 %v286, 0.0
    %v438 = vmax.f32 %v288, 0.0
    %v439 = vmax.f32 %v290, 0.0
    %v440 = vmax.f32 %v294, 0.0
    %v441 = vmax.f32 %v296, 0.0
    %v442 = vmax.f32 %v298, 0.0
    %v443 = vmax.f32 %v300, 0.0
    %v444 = vmax.f32 %v304, 0.0
    %v445 = vmax.f32 %v306, 0.0
    %v446 = vmax.f32 %v308, 0.0
    %v447 = vmax.f32 %v310, 0.0
    %v448 = vmax.f32 %v314, 0.0
    %v449 = vmax.f32 %v316, 0.0
    %v450 = vmax.f32 %v318, 0.0
    %v451 = vmax.f32 %v320, 0.0
    %v452 = vmax.f32 %v324, 0.0
    %v453 = vmax.f32 %v326, 0.0
    %v454 = vmax.f32 %v328, 0.0
    %v455 = vmax.f32 %v330, 0.0
    %v456 = vmax.f32 %v334, 0.0
    %v457 = vmax.f32 %v336, 0.0
    %v458 = vmax.f32 %v338, 0.0
    %v459 = vmax.f32 %v340, 0.0
    %v460 = vmax.f32 %v344, 0.0
    %v461 = vmax.f32 %v346, 0.0
    %v462 = vmax.f32 %v348, 0.0
    %v463 = vmax.f32 %v350, 0.0
    %v464 = vmax.f32 %v354, 0.0
    %v465 = vmax.f32 %v356, 0.0
    %v466 = vmax.f32 %v358, 0.0
    %v467 = vmax.f32 %v360, 0.0
    %v468 = vmax.f32 %v364, 0.0
    %v469 = vmax.f32 %v366, 0.0
    %v470 = vmax.f32 %v368, 0.0
    %v471 = vmax.f32 %v370, 0.0
    %v472 = vmax.f32 %v374, 0.0
    %v473 = vmax.f32 %v376, 0.0
    %v474 = vmax.f32 %v378, 0.0
    %v475 = vmax.f32 %v380, 0.0
    %v476 = vmax.f32 %v384, 0.0
    %v477 = vmax.f32 %v386, 0.0
    %v478 = vmax.f32 %v388, 0.0
    %v479 = vmax.f32 %v390, 0.0
    %v480 = vmax.f32 %v394, 0.0
    %v481 = vmax.f32 %v396, 0.0
    %v482 = vmax.f32 %v398, 0.0
    %v483 = vmax.f32 %v400, 0.0
    %v484 = vmax.f32 %v404, 0.0
    %v485 = vmax.f32 %v406, 0.0
    %v486 = vmax.f32 %v408, 0.0
    %v487 = vmax.f32 %v410, 0.0
    %v488 = vmax.f32 %v414, 0.0
    %v489 = vmax.f32 %v416, 0.0
    %v490 = vmax.f32 %v418, 0.0
    %v491 = vmax.f32 %v420, 0.0
    %v492 = vmax.f32 %v424, 0.0
    %v493 = vmax.f32 %v426, 0.0
    %v494 = vmax.f32 %v428, 0.0
    %v495 = vmax.f32 %v430, 0.0
    %v496 = vpack.c.bf16 %v434, %v432
    %v497 = vpack.c.bf16 %v435, %v433
    %v498 = vpack.c.bf16 %v438, %v436
    %v499 = vpack.c.bf16 %v439, %v437
    %v500 = vpack.c.bf16 %v442, %v440
    %v501 = vpack.c.bf16 %v443, %v441
    %v502 = vpack.c.bf16 %v446, %v444
    %v503 = vpack.c.bf16 %v447, %v445
    %v504 = vpack.c.bf16 %v450, %v448
    %v505 = vpack.c.bf16 %v451, %v449
    %v506 = vpack.c.bf16 %v454, %v452
    %v507 = vpack.c.bf16 %v455, %v453
    %v508 = vpack.c.bf16 %v458, %v456
    %v509 = vpack.c.bf16 %v459, %v457
    %v510 = vpack.c.bf16 %v462, %v460
    %v511 = vpack.c.bf16 %v463, %v461
    %v512 = vpack.c.bf16 %v466, %v464
    %v513 = vpack.c.bf16 %v467, %v465
    %v514 = vpack.c.bf16 %v470, %v468
    %v515 = vpack.c.bf16 %v471, %v469
    %v516 = vpack.c.bf16 %v474, %v472
    %v517 = vpack.c.bf16 %v475, %v473
    %v518 = vpack.c.bf16 %v478, %v476
    %v519 = vpack.c.bf16 %v479, %v477
    %v520 = vpack.c.bf16 %v482, %v480
    %v521 = vpack.c.bf16 %v483, %v481
    %v522 = vpack.c.bf16 %v486, %v484
    %v523 = vpack.c.bf16 %v487, %v485
    %v524 = vpack.c.bf16 %v490, %v488
    %v525 = vpack.c.bf16 %v491, %v489
    %v526 = vpack.c.bf16 %v494, %v492
    %v527 = vpack.c.bf16 %v495, %v493
    %v528 = vld [vmem:[#allocation7] sm:$0xff]
    %v529 = vld [vmem:[#allocation7 + $0x8] sm:$0xff]
    %v530 = vld [vmem:[#allocation7 + $0x10] sm:$0xff]
    %v531 = vld [vmem:[#allocation7 + $0x18] sm:$0xff]
    %v532 = vld [vmem:[#allocation7 + $0x20] sm:$0xff]
    %v533 = vld [vmem:[#allocation7 + $0x28] sm:$0xff]
    %v534 = vld [vmem:[#allocation7 + $0x30] sm:$0xff]
    %v535 = vld [vmem:[#allocation7 + $0x38] sm:$0xff]
    %v536 = vld [vmem:[#allocation7 + $0x40] sm:$0xff]
    %v537 = vld [vmem:[#allocation7 + $0x48] sm:$0xff]
    %v538 = vld [vmem:[#allocation7 + $0x50] sm:$0xff]
    %v539 = vld [vmem:[#allocation7 + $0x58] sm:$0xff]
    %v540 = vld [vmem:[#allocation7 + $0x60] sm:$0xff]
    %v541 = vld [vmem:[#allocation7 + $0x68] sm:$0xff]
    %v542 = vld [vmem:[#allocation7 + $0x70] sm:$0xff]
    %v543 = vld [vmem:[#allocation7 + $0x78] sm:$0xff]
    %v544 = vld [vmem:[#allocation7 + $0x80] sm:$0xff]
    %v545 = vld [vmem:[#allocation7 + $0x88] sm:$0xff]
    %v546 = vld [vmem:[#allocation7 + $0x90] sm:$0xff]
    %v547 = vld [vmem:[#allocation7 + $0x98] sm:$0xff]
    %v548 = vld [vmem:[#allocation7 + $0xa0] sm:$0xff]
    %v549 = vld [vmem:[#allocation7 + $0xa8] sm:$0xff]
    %v550 = vld [vmem:[#allocation7 + $0xb0] sm:$0xff]
    %v551 = vld [vmem:[#allocation7 + $0xb8] sm:$0xff]
    %v552 = vld [vmem:[#allocation7 + $0xc0] sm:$0xff]
    %v553 = vld [vmem:[#allocation7 + $0xc8] sm:$0xff]
    %v554 = vld [vmem:[#allocation7 + $0xd0] sm:$0xff]
    %v555 = vld [vmem:[#allocation7 + $0xd8] sm:$0xff]
    %v556 = vld [vmem:[#allocation7 + $0xe0] sm:$0xff]
    %v557 = vld [vmem:[#allocation7 + $0xe8] sm:$0xff]
    %v558 = vld [vmem:[#allocation7 + $0xf0] sm:$0xff]
    %v559 = vld [vmem:[#allocation7 + $0xf8] sm:$0xff]
    %v560 = vld [vmem:[%s4] sm:$0x3]
    %v562 = vlaneseq
    %v563 = vshrl.u32 %v562, 7
    %v564 = vsub.s32 0, %v563
    %v565 = vrot.slane %v560, %v564
    %v566 = vlaneseq
    %v567 = vshrl.u32 %v566, 7
    %v568 = vsub.s32 1, %v567
    %v569 = vrot.slane %v560, %v568
    %v604 = vunpack.c.l.b16 %v528
    %v605 = vunpack.c.h.b16 %v528
    %v606 = vunpack.c.l.b16 %v529
    %v607 = vunpack.c.h.b16 %v529
    %v608 = vunpack.c.l.b16 %v530
    %v609 = vunpack.c.h.b16 %v530
    %v610 = vunpack.c.l.b16 %v531
    %v611 = vunpack.c.h.b16 %v531
    %v612 = vunpack.c.l.b16 %v532
    %v613 = vunpack.c.h.b16 %v532
    %v614 = vunpack.c.l.b16 %v533
    %v615 = vunpack.c.h.b16 %v533
    %v616 = vunpack.c.l.b16 %v534
    %v617 = vunpack.c.h.b16 %v534
    %v618 = vunpack.c.l.b16 %v535
    %v619 = vunpack.c.h.b16 %v535
    %v620 = vunpack.c.l.b16 %v536
    %v621 = vunpack.c.h.b16 %v536
    %v622 = vunpack.c.l.b16 %v537
    %v623 = vunpack.c.h.b16 %v537
    %v624 = vunpack.c.l.b16 %v538
    %v625 = vunpack.c.h.b16 %v538
    %v626 = vunpack.c.l.b16 %v539
    %v627 = vunpack.c.h.b16 %v539
    %v628 = vunpack.c.l.b16 %v540
    %v629 = vunpack.c.h.b16 %v540
    %v630 = vunpack.c.l.b16 %v541
    %v631 = vunpack.c.h.b16 %v541
    %v632 = vunpack.c.l.b16 %v542
    %v633 = vunpack.c.h.b16 %v542
    %v634 = vunpack.c.l.b16 %v543
    %v635 = vunpack.c.h.b16 %v543
    %v636 = vunpack.c.l.b16 %v544
    %v637 = vunpack.c.h.b16 %v544
    %v638 = vunpack.c.l.b16 %v545
    %v639 = vunpack.c.h.b16 %v545
    %v640 = vunpack.c.l.b16 %v546
    %v641 = vunpack.c.h.b16 %v546
    %v642 = vunpack.c.l.b16 %v547
    %v643 = vunpack.c.h.b16 %v547
    %v644 = vunpack.c.l.b16 %v548
    %v645 = vunpack.c.h.b16 %v548
    %v646 = vunpack.c.l.b16 %v549
    %v647 = vunpack.c.h.b16 %v549
    %v648 = vunpack.c.l.b16 %v550
    %v649 = vunpack.c.h.b16 %v550
    %v650 = vunpack.c.l.b16 %v551
    %v651 = vunpack.c.h.b16 %v551
    %v652 = vunpack.c.l.b16 %v552
    %v653 = vunpack.c.h.b16 %v552
    %v654 = vunpack.c.l.b16 %v553
    %v655 = vunpack.c.h.b16 %v553
    %v656 = vunpack.c.l.b16 %v554
    %v657 = vunpack.c.h.b16 %v554
    %v658 = vunpack.c.l.b16 %v555
    %v659 = vunpack.c.h.b16 %v555
    %v660 = vunpack.c.l.b16 %v556
    %v661 = vunpack.c.h.b16 %v556
    %v662 = vunpack.c.l.b16 %v557
    %v663 = vunpack.c.h.b16 %v557
    %v664 = vunpack.c.l.b16 %v558
    %v665 = vunpack.c.h.b16 %v558
    %v666 = vunpack.c.l.b16 %v559
    %v667 = vunpack.c.h.b16 %v559
    %v668 = vpack.c.b16 %v606, %v604
    %v669 = vpack.c.b16 %v607, %v605
    %v670 = vpack.c.b16 %v610, %v608
    %v671 = vpack.c.b16 %v611, %v609
    %v672 = vpack.c.b16 %v614, %v612
    %v673 = vpack.c.b16 %v615, %v613
    %v674 = vpack.c.b16 %v618, %v616
    %v675 = vpack.c.b16 %v619, %v617
    %v676 = vpack.c.b16 %v622, %v620
    %v677 = vpack.c.b16 %v623, %v621
    %v678 = vpack.c.b16 %v626, %v624
    %v679 = vpack.c.b16 %v627, %v625
    %v680 = vpack.c.b16 %v630, %v628
    %v681 = vpack.c.b16 %v631, %v629
    %v682 = vpack.c.b16 %v634, %v632
    %v683 = vpack.c.b16 %v635, %v633
    %v684 = vpack.c.b16 %v638, %v636
    %v685 = vpack.c.b16 %v639, %v637
    %v686 = vpack.c.b16 %v642, %v640
    %v687 = vpack.c.b16 %v643, %v641
    %v688 = vpack.c.b16 %v646, %v644
    %v689 = vpack.c.b16 %v647, %v645
    %v690 = vpack.c.b16 %v650, %v648
    %v691 = vpack.c.b16 %v651, %v649
    %v692 = vpack.c.b16 %v654, %v652
    %v693 = vpack.c.b16 %v655, %v653
    %v694 = vpack.c.b16 %v658, %v656
    %v695 = vpack.c.b16 %v659, %v657
    %v696 = vpack.c.b16 %v662, %v660
    %v697 = vpack.c.b16 %v663, %v661
    %v698 = vpack.c.b16 %v666, %v664
    %v699 = vpack.c.b16 %v667, %v665
    %732 = vmatprep.subr.bf16.mxu0 %v669
    %733 = vmatpush1.bf16.msra.mxu0 %v668
    %734 = vmatprep.subr.bf16.mxu0 %v671
    %735 = vmatpush1.bf16.msra.mxu0 %v670
    %736 = vmatprep.subr.bf16.mxu0 %v673
    %737 = vmatpush1.bf16.msra.mxu0 %v672
    %738 = vmatprep.subr.bf16.mxu0 %v675
    %739 = vmatpush1.bf16.msra.mxu0 %v674
    %740 = vmatprep.subr.bf16.mxu0 %v677
    %741 = vmatpush1.bf16.msra.mxu0 %v676
    %742 = vmatprep.subr.bf16.mxu0 %v679
    %743 = vmatpush1.bf16.msra.mxu0 %v678
    %744 = vmatprep.subr.bf16.mxu0 %v681
    %745 = vmatpush1.bf16.msra.mxu0 %v680
    %746 = vmatprep.subr.bf16.mxu0 %v683
    %747 = vmatpush1.bf16.msra.mxu0 %v682
    %748 = vmatprep.subr.bf16.mxu0 %v685
    %749 = vmatpush1.bf16.msra.mxu0 %v684
    %750 = vmatprep.subr.bf16.mxu0 %v687
    %751 = vmatpush1.bf16.msra.mxu0 %v686
    %752 = vmatprep.subr.bf16.mxu0 %v689
    %753 = vmatpush1.bf16.msra.mxu0 %v688
    %754 = vmatprep.subr.bf16.mxu0 %v691
    %755 = vmatpush1.bf16.msra.mxu0 %v690
    %756 = vmatprep.subr.bf16.mxu0 %v693
    %757 = vmatpush1.bf16.msra.mxu0 %v692
    %758 = vmatprep.subr.bf16.mxu0 %v695
    %759 = vmatpush1.bf16.msra.mxu0 %v694
    %760 = vmatprep.subr.bf16.mxu0 %v697
    %761 = vmatpush1.bf16.msra.mxu0 %v696
    %762 = vmatprep.subr.bf16.mxu0 %v699
    %763 = vmatpush1.bf16.msra.mxu0 %v698
    %764 = vmatprep.mubr.bf16.mxu0 %v497
    %765 = vmatmul.mubr.bf16.gmra.mrb[0].mxu0 %v496
    %v766 = vpop.f32.mrb[0].mxu0
    %v767 = vadd.f32 %v565, %v766
    %v768 = vpop.f32.mrb[0].mxu0
    %v769 = vadd.f32 %v569, %v768
    %v770 = vpop.f32.mrb[0].mxu0
    %v771 = vadd.f32 %v565, %v770
    %v772 = vpop.f32.mrb[0].mxu0
    %v773 = vadd.f32 %v569, %v772
    %774 = vmatprep.mubr.bf16.mxu0 %v499
    %775 = vmatmul.mubr.bf16.gmra.mrb[0].mxu0 %v498
    %v776 = vpop.f32.mrb[0].mxu0
    %v777 = vadd.f32 %v565, %v776
    %v778 = vpop.f32.mrb[0].mxu0
    %v779 = vadd.f32 %v569, %v778
    %v780 = vpop.f32.mrb[0].mxu0
    %v781 = vadd.f32 %v565, %v780
    %v782 = vpop.f32.mrb[0].mxu0
    %v783 = vadd.f32 %v569, %v782
    %784 = vmatprep.mubr.bf16.mxu0 %v501
    %785 = vmatmul.mubr.bf16.gmra.mrb[0].mxu0 %v500
    %v786 = vpop.f32.mrb[0].mxu0
    %v787 = vadd.f32 %v565, %v786
    %v788 = vpop.f32.mrb[0].mxu0
    %v789 = vadd.f32 %v569, %v788
    %v790 = vpop.f32.mrb[0].mxu0
    %v791 = vadd.f32 %v565, %v790
    %v792 = vpop.f32.mrb[0].mxu0
    %v793 = vadd.f32 %v569, %v792
    %794 = vmatprep.mubr.bf16.mxu0 %v503
    %795 = vmatmul.mubr.bf16.gmra.mrb[0].mxu0 %v502
    %v796 = vpop.f32.mrb[0].mxu0
    %v797 = vadd.f32 %v565, %v796
    %v798 = vpop.f32.mrb[0].mxu0
    %v799 = vadd.f32 %v569, %v798
    %v800 = vpop.f32.mrb[0].mxu0
    %v801 = vadd.f32 %v565, %v800
    %v802 = vpop.f32.mrb[0].mxu0
    %v803 = vadd.f32 %v569, %v802
    %804 = vmatprep.mubr.bf16.mxu0 %v505
    %805 = vmatmul.mubr.bf16.gmra.mrb[0].mxu0 %v504
    %v806 = vpop.f32.mrb[0].mxu0
    %v807 = vadd.f32 %v565, %v806
    %v808 = vpop.f32.mrb[0].mxu0
    %v809 = vadd.f32 %v569, %v808
    %v810 = vpop.f32.mrb[0].mxu0
    %v811 = vadd.f32 %v565, %v810
    %v812 = vpop.f32.mrb[0].mxu0
    %v813 = vadd.f32 %v569, %v812
    %814 = vmatprep.mubr.bf16.mxu0 %v507
    %815 = vmatmul.mubr.bf16.gmra.mrb[0].mxu0 %v506
    %v816 = vpop.f32.mrb[0].mxu0
    %v817 = vadd.f32 %v565, %v816
    %v818 = vpop.f32.mrb[0].mxu0
    %v819 = vadd.f32 %v569, %v818
    %v820 = vpop.f32.mrb[0].mxu0
    %v821 = vadd.f32 %v565, %v820
    %v822 = vpop.f32.mrb[0].mxu0
    %v823 = vadd.f32 %v569, %v822
    %824 = vmatprep.mubr.bf16.mxu0 %v509
    %825 = vmatmul.mubr.bf16.gmra.mrb[0].mxu0 %v508
    %v826 = vpop.f32.mrb[0].mxu0
    %v827 = vadd.f32 %v565, %v826
    %v828 = vpop.f32.mrb[0].mxu0
    %v829 = vadd.f32 %v569, %v828
    %v830 = vpop.f32.mrb[0].mxu0
    %v831 = vadd.f32 %v565, %v830
    %v832 = vpop.f32.mrb[0].mxu0
    %v833 = vadd.f32 %v569, %v832
    %834 = vmatprep.mubr.bf16.mxu0 %v511
    %835 = vmatmul.mubr.bf16.gmra.mrb[0].mxu0 %v510
    %v836 = vpop.f32.mrb[0].mxu0
    %v837 = vadd.f32 %v565, %v836
    %v838 = vpop.f32.mrb[0].mxu0
    %v839 = vadd.f32 %v569, %v838
    %v840 = vpop.f32.mrb[0].mxu0
    %v841 = vadd.f32 %v565, %v840
    %v842 = vpop.f32.mrb[0].mxu0
    %v843 = vadd.f32 %v569, %v842
    %844 = vmatprep.mubr.bf16.mxu0 %v513
    %845 = vmatmul.mubr.bf16.gmra.mrb[0].mxu0 %v512
    %v846 = vpop.f32.mrb[0].mxu0
    %v847 = vadd.f32 %v565, %v846
    %v848 = vpop.f32.mrb[0].mxu0
    %v849 = vadd.f32 %v569, %v848
    %v850 = vpop.f32.mrb[0].mxu0
    %v851 = vadd.f32 %v565, %v850
    %v852 = vpop.f32.mrb[0].mxu0
    %v853 = vadd.f32 %v569, %v852
    %854 = vmatprep.mubr.bf16.mxu0 %v515
    %855 = vmatmul.mubr.bf16.gmra.mrb[0].mxu0 %v514
    %v856 = vpop.f32.mrb[0].mxu0
    %v857 = vadd.f32 %v565, %v856
    %v858 = vpop.f32.mrb[0].mxu0
    %v859 = vadd.f32 %v569, %v858
    %v860 = vpop.f32.mrb[0].mxu0
    %v861 = vadd.f32 %v565, %v860
    %v862 = vpop.f32.mrb[0].mxu0
    %v863 = vadd.f32 %v569, %v862
    %864 = vmatprep.mubr.bf16.mxu0 %v517
    %865 = vmatmul.mubr.bf16.gmra.mrb[0].mxu0 %v516
    %v866 = vpop.f32.mrb[0].mxu0
    %v867 = vadd.f32 %v565, %v866
    %v868 = vpop.f32.mrb[0].mxu0
    %v869 = vadd.f32 %v569, %v868
    %v870 = vpop.f32.mrb[0].mxu0
    %v871 = vadd.f32 %v565, %v870
    %v872 = vpop.f32.mrb[0].mxu0
    %v873 = vadd.f32 %v569, %v872
    %874 = vmatprep.mubr.bf16.mxu0 %v519
    %875 = vmatmul.mubr.bf16.gmra.mrb[0].mxu0 %v518
    %v876 = vpop.f32.mrb[0].mxu0
    %v877 = vadd.f32 %v565, %v876
    %v878 = vpop.f32.mrb[0].mxu0
    %v879 = vadd.f32 %v569, %v878
    %v880 = vpop.f32.mrb[0].mxu0
    %v881 = vadd.f32 %v565, %v880
    %v882 = vpop.f32.mrb[0].mxu0
    %v883 = vadd.f32 %v569, %v882
    %884 = vmatprep.mubr.bf16.mxu0 %v521
    %885 = vmatmul.mubr.bf16.gmra.mrb[0].mxu0 %v520
    %v886 = vpop.f32.mrb[0].mxu0
    %v887 = vadd.f32 %v565, %v886
    %v888 = vpop.f32.mrb[0].mxu0
    %v889 = vadd.f32 %v569, %v888
    %v890 = vpop.f32.mrb[0].mxu0
    %v891 = vadd.f32 %v565, %v890
    %v892 = vpop.f32.mrb[0].mxu0
    %v893 = vadd.f32 %v569, %v892
    %894 = vmatprep.mubr.bf16.mxu0 %v523
    %895 = vmatmul.mubr.bf16.gmra.mrb[0].mxu0 %v522
    %v896 = vpop.f32.mrb[0].mxu0
    %v897 = vadd.f32 %v565, %v896
    %v898 = vpop.f32.mrb[0].mxu0
    %v899 = vadd.f32 %v569, %v898
    %v900 = vpop.f32.mrb[0].mxu0
    %v901 = vadd.f32 %v565, %v900
    %v902 = vpop.f32.mrb[0].mxu0
    %v903 = vadd.f32 %v569, %v902
    %904 = vmatprep.mubr.bf16.mxu0 %v525
    %905 = vmatmul.mubr.bf16.gmra.mrb[0].mxu0 %v524
    %v906 = vpop.f32.mrb[0].mxu0
    %v907 = vadd.f32 %v565, %v906
    %v908 = vpop.f32.mrb[0].mxu0
    %v909 = vadd.f32 %v569, %v908
    %v910 = vpop.f32.mrb[0].mxu0
    %v911 = vadd.f32 %v565, %v910
    %v912 = vpop.f32.mrb[0].mxu0
    %v913 = vadd.f32 %v569, %v912
    %914 = vmatprep.mubr.bf16.mxu0 %v527
    %915 = vmatmul.mubr.bf16.gmra.mrb[0].mxu0 %v526
    %v916 = vpop.f32.mrb[0].mxu0
    %v917 = vadd.f32 %v565, %v916
    %v918 = vpop.f32.mrb[0].mxu0
    %v919 = vadd.f32 %v569, %v918
    %v920 = vpop.f32.mrb[0].mxu0
    %v921 = vadd.f32 %v565, %v920
    %v922 = vpop.f32.mrb[0].mxu0
    %v923 = vadd.f32 %v569, %v922
    %924 = vdwg.mxu0
    %v925 = vmax.f32 %v767, 0.0
    %v926 = vmax.f32 %v769, 0.0
    %v927 = vmax.f32 %v771, 0.0
    %v928 = vmax.f32 %v773, 0.0
    %v929 = vmax.f32 %v777, 0.0
    %v930 = vmax.f32 %v779, 0.0
    %v931 = vmax.f32 %v781, 0.0
    %v932 = vmax.f32 %v783, 0.0
    %v933 = vmax.f32 %v787, 0.0
    %v934 = vmax.f32 %v789, 0.0
    %v935 = vmax.f32 %v791, 0.0
    %v936 = vmax.f32 %v793, 0.0
    %v937 = vmax.f32 %v797, 0.0
    %v938 = vmax.f32 %v799, 0.0
    %v939 = vmax.f32 %v801, 0.0
    %v940 = vmax.f32 %v803, 0.0
    %v941 = vmax.f32 %v807, 0.0
    %v942 = vmax.f32 %v809, 0.0
    %v943 = vmax.f32 %v811, 0.0
    %v944 = vmax.f32 %v813, 0.0
    %v945 = vmax.f32 %v817, 0.0
    %v946 = vmax.f32 %v819, 0.0
    %v947 = vmax.f32 %v821, 0.0
    %v948 = vmax.f32 %v823, 0.0
    %v949 = vmax.f32 %v827, 0.0
    %v950 = vmax.f32 %v829, 0.0
    %v951 = vmax.f32 %v831, 0.0
    %v952 = vmax.f32 %v833, 0.0
    %v953 = vmax.f32 %v837, 0.0
    %v954 = vmax.f32 %v839, 0.0
    %v955 = vmax.f32 %v841, 0.0
    %v956 = vmax.f32 %v843, 0.0
    %v957 = vmax.f32 %v847, 0.0
    %v958 = vmax.f32 %v849, 0.0
    %v959 = vmax.f32 %v851, 0.0
    %v960 = vmax.f32 %v853, 0.0
    %v961 = vmax.f32 %v857, 0.0
    %v962 = vmax.f32 %v859, 0.0
    %v963 = vmax.f32 %v861, 0.0
    %v964 = vmax.f32 %v863, 0.0
    %v965 = vmax.f32 %v867, 0.0
    %v966 = vmax.f32 %v869, 0.0
    %v967 = vmax.f32 %v871, 0.0
    %v968 = vmax.f32 %v873, 0.0
    %v969 = vmax.f32 %v877, 0.0
    %v970 = vmax.f32 %v879, 0.0
    %v971 = vmax.f32 %v881, 0.0
    %v972 = vmax.f32 %v883, 0.0
    %v973 = vmax.f32 %v887, 0.0
    %v974 = vmax.f32 %v889, 0.0
    %v975 = vmax.f32 %v891, 0.0
    %v976 = vmax.f32 %v893, 0.0
    %v977 = vmax.f32 %v897, 0.0
    %v978 = vmax.f32 %v899, 0.0
    %v979 = vmax.f32 %v901, 0.0
    %v980 = vmax.f32 %v903, 0.0
    %v981 = vmax.f32 %v907, 0.0
    %v982 = vmax.f32 %v909, 0.0
    %v983 = vmax.f32 %v911, 0.0
    %v984 = vmax.f32 %v913, 0.0
    %v985 = vmax.f32 %v917, 0.0
    %v986 = vmax.f32 %v919, 0.0
    %v987 = vmax.f32 %v921, 0.0
    %v988 = vmax.f32 %v923, 0.0
    %v989 = vpack.c.bf16 %v927, %v925
    %v990 = vpack.c.bf16 %v928, %v926
    %v991 = vpack.c.bf16 %v931, %v929
    %v992 = vpack.c.bf16 %v932, %v930
    %v993 = vpack.c.bf16 %v935, %v933
    %v994 = vpack.c.bf16 %v936, %v934
    %v995 = vpack.c.bf16 %v939, %v937
    %v996 = vpack.c.bf16 %v940, %v938
    %v997 = vpack.c.bf16 %v943, %v941
    %v998 = vpack.c.bf16 %v944, %v942
    %v999 = vpack.c.bf16 %v947, %v945
    %v1000 = vpack.c.bf16 %v948, %v946
    %v1001 = vpack.c.bf16 %v951, %v949
    %v1002 = vpack.c.bf16 %v952, %v950
    %v1003 = vpack.c.bf16 %v955, %v953
    %v1004 = vpack.c.bf16 %v956, %v954
    %v1005 = vpack.c.bf16 %v959, %v957
    %v1006 = vpack.c.bf16 %v960, %v958
    %v1007 = vpack.c.bf16 %v963, %v961
    %v1008 = vpack.c.bf16 %v964, %v962
    %v1009 = vpack.c.bf16 %v967, %v965
    %v1010 = vpack.c.bf16 %v968, %v966
    %v1011 = vpack.c.bf16 %v971, %v969
    %v1012 = vpack.c.bf16 %v972, %v970
    %v1013 = vpack.c.bf16 %v975, %v973
    %v1014 = vpack.c.bf16 %v976, %v974
    %v1015 = vpack.c.bf16 %v979, %v977
    %v1016 = vpack.c.bf16 %v980, %v978
    %v1017 = vpack.c.bf16 %v983, %v981
    %v1018 = vpack.c.bf16 %v984, %v982
    %v1019 = vpack.c.bf16 %v987, %v985
    %v1020 = vpack.c.bf16 %v988, %v986
    %v1021 = vld [vmem:[#allocation8] sm:$0xf]
    %v1022 = vld [vmem:[#allocation8 + $0x4] sm:$0xf]
    %v1023 = vld [vmem:[#allocation8 + $0x8] sm:$0xf]
    %v1024 = vld [vmem:[#allocation8 + $0xc] sm:$0xf]
    %v1025 = vld [vmem:[#allocation8 + $0x10] sm:$0xf]
    %v1026 = vld [vmem:[#allocation8 + $0x14] sm:$0xf]
    %v1027 = vld [vmem:[#allocation8 + $0x18] sm:$0xf]
    %v1028 = vld [vmem:[#allocation8 + $0x1c] sm:$0xf]
    %v1029 = vld [vmem:[#allocation8 + $0x20] sm:$0xf]
    %v1030 = vld [vmem:[#allocation8 + $0x24] sm:$0xf]
    %v1031 = vld [vmem:[#allocation8 + $0x28] sm:$0xf]
    %v1032 = vld [vmem:[#allocation8 + $0x2c] sm:$0xf]
    %v1033 = vld [vmem:[#allocation8 + $0x30] sm:$0xf]
    %v1034 = vld [vmem:[#allocation8 + $0x34] sm:$0xf]
    %v1035 = vld [vmem:[#allocation8 + $0x38] sm:$0xf]
    %v1036 = vld [vmem:[#allocation8 + $0x3c] sm:$0xf]
    %v1037 = vld [vmem:[#allocation8 + $0x40] sm:$0xf]
    %v1038 = vld [vmem:[#allocation8 + $0x44] sm:$0xf]
    %v1039 = vld [vmem:[#allocation8 + $0x48] sm:$0xf]
    %v1040 = vld [vmem:[#allocation8 + $0x4c] sm:$0xf]
    %v1041 = vld [vmem:[#allocation8 + $0x50] sm:$0xf]
    %v1042 = vld [vmem:[#allocation8 + $0x54] sm:$0xf]
    %v1043 = vld [vmem:[#allocation8 + $0x58] sm:$0xf]
    %v1044 = vld [vmem:[#allocation8 + $0x5c] sm:$0xf]
    %v1045 = vld [vmem:[#allocation8 + $0x60] sm:$0xf]
    %v1046 = vld [vmem:[#allocation8 + $0x64] sm:$0xf]
    %v1047 = vld [vmem:[#allocation8 + $0x68] sm:$0xf]
    %v1048 = vld [vmem:[#allocation8 + $0x6c] sm:$0xf]
    %v1049 = vld [vmem:[#allocation8 + $0x70] sm:$0xf]
    %v1050 = vld [vmem:[#allocation8 + $0x74] sm:$0xf]
    %v1051 = vld [vmem:[#allocation8 + $0x78] sm:$0xf]
    %v1052 = vld [vmem:[#allocation8 + $0x7c] sm:$0xf]
    %v1053 = vld [vmem:[%s6] sm:$0x1]
    %v1055 = vlaneseq
    %v1056 = vshrl.u32 %v1055, 7
    %v1057 = vsub.s32 0, %v1056
    %v1058 = vrot.slane %v1053, %v1057
    %v1092 = vunpack.c.l.b16 %v1021
    %v1093 = vunpack.c.l.b16 %v1022
    %v1094 = vunpack.c.l.b16 %v1023
    %v1095 = vunpack.c.l.b16 %v1024
    %v1096 = vunpack.c.l.b16 %v1025
    %v1097 = vunpack.c.l.b16 %v1026
    %v1098 = vunpack.c.l.b16 %v1027
    %v1099 = vunpack.c.l.b16 %v1028
    %v1100 = vunpack.c.l.b16 %v1029
    %v1101 = vunpack.c.l.b16 %v1030
    %v1102 = vunpack.c.l.b16 %v1031
    %v1103 = vunpack.c.l.b16 %v1032
    %v1104 = vunpack.c.l.b16 %v1033
    %v1105 = vunpack.c.l.b16 %v1034
    %v1106 = vunpack.c.l.b16 %v1035
    %v1107 = vunpack.c.l.b16 %v1036
    %v1108 = vunpack.c.l.b16 %v1037
    %v1109 = vunpack.c.l.b16 %v1038
    %v1110 = vunpack.c.l.b16 %v1039
    %v1111 = vunpack.c.l.b16 %v1040
    %v1112 = vunpack.c.l.b16 %v1041
    %v1113 = vunpack.c.l.b16 %v1042
    %v1114 = vunpack.c.l.b16 %v1043
    %v1115 = vunpack.c.l.b16 %v1044
    %v1116 = vunpack.c.l.b16 %v1045
    %v1117 = vunpack.c.l.b16 %v1046
    %v1118 = vunpack.c.l.b16 %v1047
    %v1119 = vunpack.c.l.b16 %v1048
    %v1120 = vunpack.c.l.b16 %v1049
    %v1121 = vunpack.c.l.b16 %v1050
    %v1122 = vunpack.c.l.b16 %v1051
    %v1123 = vunpack.c.l.b16 %v1052
    %v1124 = vpack.c.b16 %v1093, %v1092
    %v1125 = vpack.c.b16 %v1095, %v1094
    %v1126 = vpack.c.b16 %v1097, %v1096
    %v1127 = vpack.c.b16 %v1099, %v1098
    %v1128 = vpack.c.b16 %v1101, %v1100
    %v1129 = vpack.c.b16 %v1103, %v1102
    %v1130 = vpack.c.b16 %v1105, %v1104
    %v1131 = vpack.c.b16 %v1107, %v1106
    %v1132 = vpack.c.b16 %v1109, %v1108
    %v1133 = vpack.c.b16 %v1111, %v1110
    %v1134 = vpack.c.b16 %v1113, %v1112
    %v1135 = vpack.c.b16 %v1115, %v1114
    %v1136 = vpack.c.b16 %v1117, %v1116
    %v1137 = vpack.c.b16 %v1119, %v1118
    %v1138 = vpack.c.b16 %v1121, %v1120
    %v1139 = vpack.c.b16 %v1123, %v1122
    %1156 = vmatprep.subr.bf16.mxu0 0
    %1157 = vmatpush1.bf16.msra.mxu0 %v1124
    %1158 = vmatprep.subr.bf16.mxu0 0
    %1159 = vmatpush1.bf16.msra.mxu0 %v1125
    %1160 = vmatprep.subr.bf16.mxu0 0
    %1161 = vmatpush1.bf16.msra.mxu0 %v1126
    %1162 = vmatprep.subr.bf16.mxu0 0
    %1163 = vmatpush1.bf16.msra.mxu0 %v1127
    %1164 = vmatprep.subr.bf16.mxu0 0
    %1165 = vmatpush1.bf16.msra.mxu0 %v1128
    %1166 = vmatprep.subr.bf16.mxu0 0
    %1167 = vmatpush1.bf16.msra.mxu0 %v1129
    %1168 = vmatprep.subr.bf16.mxu0 0
    %1169 = vmatpush1.bf16.msra.mxu0 %v1130
    %1170 = vmatprep.subr.bf16.mxu0 0
    %1171 = vmatpush1.bf16.msra.mxu0 %v1131
    %1172 = vmatprep.subr.bf16.mxu0 0
    %1173 = vmatpush1.bf16.msra.mxu0 %v1132
    %1174 = vmatprep.subr.bf16.mxu0 0
    %1175 = vmatpush1.bf16.msra.mxu0 %v1133
    %1176 = vmatprep.subr.bf16.mxu0 0
    %1177 = vmatpush1.bf16.msra.mxu0 %v1134
    %1178 = vmatprep.subr.bf16.mxu0 0
    %1179 = vmatpush1.bf16.msra.mxu0 %v1135
    %1180 = vmatprep.subr.bf16.mxu0 0
    %1181 = vmatpush1.bf16.msra.mxu0 %v1136
    %1182 = vmatprep.subr.bf16.mxu0 0
    %1183 = vmatpush1.bf16.msra.mxu0 %v1137
    %1184 = vmatprep.subr.bf16.mxu0 0
    %1185 = vmatpush1.bf16.msra.mxu0 %v1138
    %1186 = vmatprep.subr.bf16.mxu0 0
    %1187 = vmatpush1.bf16.msra.mxu0 %v1139
    %1188 = vmatprep.mubr.bf16.mxu0 %v990
    %1189 = vmatmul.mubr.bf16.gmra.mrb[0].mxu0 %v989
    %v1190 = vpop.f32.mrb[0].mxu0
    %v1191 = vadd.f32 %v1058, %v1190
    %v1192 = vpop.f32.mrb[0].mxu0
    %v1193 = vpop.f32.mrb[0].mxu0
    %v1194 = vadd.f32 %v1058, %v1193
    %v1195 = vpop.f32.mrb[0].mxu0
    %1196 = vmatprep.mubr.bf16.mxu0 %v992
    %1197 = vmatmul.mubr.bf16.gmra.mrb[0].mxu0 %v991
    %v1198 = vpop.f32.mrb[0].mxu0
    %v1199 = vadd.f32 %v1058, %v1198
    %v1200 = vpop.f32.mrb[0].mxu0
    %v1201 = vpop.f32.mrb[0].mxu0
    %v1202 = vadd.f32 %v1058, %v1201
    %v1203 = vpop.f32.mrb[0].mxu0
    %1204 = vmatprep.mubr.bf16.mxu0 %v994
    %1205 = vmatmul.mubr.bf16.gmra.mrb[0].mxu0 %v993
    %v1206 = vpop.f32.mrb[0].mxu0
    %v1207 = vadd.f32 %v1058, %v1206
    %v1208 = vpop.f32.mrb[0].mxu0
    %v1209 = vpop.f32.mrb[0].mxu0
    %v1210 = vadd.f32 %v1058, %v1209
    %v1211 = vpop.f32.mrb[0].mxu0
    %1212 = vmatprep.mubr.bf16.mxu0 %v996
    %1213 = vmatmul.mubr.bf16.gmra.mrb[0].mxu0 %v995
    %v1214 = vpop.f32.mrb[0].mxu0
    %v1215 = vadd.f32 %v1058, %v1214
    %v1216 = vpop.f32.mrb[0].mxu0
    %v1217 = vpop.f32.mrb[0].mxu0
    %v1218 = vadd.f32 %v1058, %v1217
    %v1219 = vpop.f32.mrb[0].mxu0
    %1220 = vmatprep.mubr.bf16.mxu0 %v998
    %1221 = vmatmul.mubr.bf16.gmra.mrb[0].mxu0 %v997
    %v1222 = vpop.f32.mrb[0].mxu0
    %v1223 = vadd.f32 %v1058, %v1222
    %v1224 = vpop.f32.mrb[0].mxu0
    %v1225 = vpop.f32.mrb[0].mxu0
    %v1226 = vadd.f32 %v1058, %v1225
    %v1227 = vpop.f32.mrb[0].mxu0
    %1228 = vmatprep.mubr.bf16.mxu0 %v1000
    %1229 = vmatmul.mubr.bf16.gmra.mrb[0].mxu0 %v999
    %v1230 = vpop.f32.mrb[0].mxu0
    %v1231 = vadd.f32 %v1058, %v1230
    %v1232 = vpop.f32.mrb[0].mxu0
    %v1233 = vpop.f32.mrb[0].mxu0
    %v1234 = vadd.f32 %v1058, %v1233
    %v1235 = vpop.f32.mrb[0].mxu0
    %1236 = vmatprep.mubr.bf16.mxu0 %v1002
    %1237 = vmatmul.mubr.bf16.gmra.mrb[0].mxu0 %v1001
    %v1238 = vpop.f32.mrb[0].mxu0
    %v1239 = vadd.f32 %v1058, %v1238
    %v1240 = vpop.f32.mrb[0].mxu0
    %v1241 = vpop.f32.mrb[0].mxu0
    %v1242 = vadd.f32 %v1058, %v1241
    %v1243 = vpop.f32.mrb[0].mxu0
    %1244 = vmatprep.mubr.bf16.mxu0 %v1004
    %1245 = vmatmul.mubr.bf16.gmra.mrb[0].mxu0 %v1003
    %v1246 = vpop.f32.mrb[0].mxu0
    %v1247 = vadd.f32 %v1058, %v1246
    %v1248 = vpop.f32.mrb[0].mxu0
    %v1249 = vpop.f32.mrb[0].mxu0
    %v1250 = vadd.f32 %v1058, %v1249
    %v1251 = vpop.f32.mrb[0].mxu0
    %1252 = vmatprep.mubr.bf16.mxu0 %v1006
    %1253 = vmatmul.mubr.bf16.gmra.mrb[0].mxu0 %v1005
    %v1254 = vpop.f32.mrb[0].mxu0
    %v1255 = vadd.f32 %v1058, %v1254
    %v1256 = vpop.f32.mrb[0].mxu0
    %v1257 = vpop.f32.mrb[0].mxu0
    %v1258 = vadd.f32 %v1058, %v1257
    %v1259 = vpop.f32.mrb[0].mxu0
    %1260 = vmatprep.mubr.bf16.mxu0 %v1008
    %1261 = vmatmul.mubr.bf16.gmra.mrb[0].mxu0 %v1007
    %v1262 = vpop.f32.mrb[0].mxu0
    %v1263 = vadd.f32 %v1058, %v1262
    %v1264 = vpop.f32.mrb[0].mxu0
    %v1265 = vpop.f32.mrb[0].mxu0
    %v1266 = vadd.f32 %v1058, %v1265
    %v1267 = vpop.f32.mrb[0].mxu0
    %1268 = vmatprep.mubr.bf16.mxu0 %v1010
    %1269 = vmatmul.mubr.bf16.gmra.mrb[0].mxu0 %v1009
    %v1270 = vpop.f32.mrb[0].mxu0
    %v1271 = vadd.f32 %v1058, %v1270
    %v1272 = vpop.f32.mrb[0].mxu0
    %v1273 = vpop.f32.mrb[0].mxu0
    %v1274 = vadd.f32 %v1058, %v1273
    %v1275 = vpop.f32.mrb[0].mxu0
    %1276 = vmatprep.mubr.bf16.mxu0 %v1012
    %1277 = vmatmul.mubr.bf16.gmra.mrb[0].mxu0 %v1011
    %v1278 = vpop.f32.mrb[0].mxu0
    %v1279 = vadd.f32 %v1058, %v1278
    %v1280 = vpop.f32.mrb[0].mxu0
    %v1281 = vpop.f32.mrb[0].mxu0
    %v1282 = vadd.f32 %v1058, %v1281
    %v1283 = vpop.f32.mrb[0].mxu0
    %1284 = vmatprep.mubr.bf16.mxu0 %v1014
    %1285 = vmatmul.mubr.bf16.gmra.mrb[0].mxu0 %v1013
    %v1286 = vpop.f32.mrb[0].mxu0
    %v1287 = vadd.f32 %v1058, %v1286
    %v1288 = vpop.f32.mrb[0].mxu0
    %v1289 = vpop.f32.mrb[0].mxu0
    %v1290 = vadd.f32 %v1058, %v1289
    %v1291 = vpop.f32.mrb[0].mxu0
    %1292 = vmatprep.mubr.bf16.mxu0 %v1016
    %1293 = vmatmul.mubr.bf16.gmra.mrb[0].mxu0 %v1015
    %v1294 = vpop.f32.mrb[0].mxu0
    %v1295 = vadd.f32 %v1058, %v1294
    %v1296 = vpop.f32.mrb[0].mxu0
    %v1297 = vpop.f32.mrb[0].mxu0
    %v1298 = vadd.f32 %v1058, %v1297
    %v1299 = vpop.f32.mrb[0].mxu0
    %1300 = vmatprep.mubr.bf16.mxu0 %v1018
    %1301 = vmatmul.mubr.bf16.gmra.mrb[0].mxu0 %v1017
    %v1302 = vpop.f32.mrb[0].mxu0
    %v1303 = vadd.f32 %v1058, %v1302
    %v1304 = vpop.f32.mrb[0].mxu0
    %v1305 = vpop.f32.mrb[0].mxu0
    %v1306 = vadd.f32 %v1058, %v1305
    %v1307 = vpop.f32.mrb[0].mxu0
    %1308 = vmatprep.mubr.bf16.mxu0 %v1020
    %1309 = vmatmul.mubr.bf16.gmra.mrb[0].mxu0 %v1019
    %v1310 = vpop.f32.mrb[0].mxu0
    %v1311 = vadd.f32 %v1058, %v1310
    %v1312 = vpop.f32.mrb[0].mxu0
    %v1313 = vpop.f32.mrb[0].mxu0
    %v1314 = vadd.f32 %v1058, %v1313
    %v1315 = vpop.f32.mrb[0].mxu0
    %1316 = vdwg.mxu0
    %v1317 = vlaneseq
    %v1318 = vand.u32 %v1317, 127
    %vm1319 = vcmp.lt.s32.totalorder %v1318, 8
    %v1320 = vsel %vm1319, %v1191, -1e+30
    %v1321 = vsel %vm1319, %v1194, -1e+30
    %v1322 = vsel %vm1319, %v1199, -1e+30
    %v1323 = vsel %vm1319, %v1202, -1e+30
    %v1324 = vsel %vm1319, %v1207, -1e+30
    %v1325 = vsel %vm1319, %v1210, -1e+30
    %v1326 = vsel %vm1319, %v1215, -1e+30
    %v1327 = vsel %vm1319, %v1218, -1e+30
    %v1328 = vsel %vm1319, %v1223, -1e+30
    %v1329 = vsel %vm1319, %v1226, -1e+30
    %v1330 = vsel %vm1319, %v1231, -1e+30
    %v1331 = vsel %vm1319, %v1234, -1e+30
    %v1332 = vsel %vm1319, %v1239, -1e+30
    %v1333 = vsel %vm1319, %v1242, -1e+30
    %v1334 = vsel %vm1319, %v1247, -1e+30
    %v1335 = vsel %vm1319, %v1250, -1e+30
    %v1336 = vsel %vm1319, %v1255, -1e+30
    %v1337 = vsel %vm1319, %v1258, -1e+30
    %v1338 = vsel %vm1319, %v1263, -1e+30
    %v1339 = vsel %vm1319, %v1266, -1e+30
    %v1340 = vsel %vm1319, %v1271, -1e+30
    %v1341 = vsel %vm1319, %v1274, -1e+30
    %v1342 = vsel %vm1319, %v1279, -1e+30
    %v1343 = vsel %vm1319, %v1282, -1e+30
    %v1344 = vsel %vm1319, %v1287, -1e+30
    %v1345 = vsel %vm1319, %v1290, -1e+30
    %v1346 = vsel %vm1319, %v1295, -1e+30
    %v1347 = vsel %vm1319, %v1298, -1e+30
    %v1348 = vsel %vm1319, %v1303, -1e+30
    %v1349 = vsel %vm1319, %v1306, -1e+30
    %v1350 = vsel %vm1319, %v1311, -1e+30
    %v1351 = vsel %vm1319, %v1314, -1e+30
    %1352 = vmax.xlane.f32.xlu0 %v1320
    %v1353 = vpop.xlane.xlu0 %1352
    %1354 = vmax.xlane.f32.xlu0 %v1321
    %v1355 = vpop.xlane.xlu0 %1354
    %1356 = vmax.xlane.f32.xlu0 %v1322
    %v1357 = vpop.xlane.xlu0 %1356
    %1358 = vmax.xlane.f32.xlu0 %v1323
    %v1359 = vpop.xlane.xlu0 %1358
    %1360 = vmax.xlane.f32.xlu0 %v1324
    %v1361 = vpop.xlane.xlu0 %1360
    %1362 = vmax.xlane.f32.xlu0 %v1325
    %v1363 = vpop.xlane.xlu0 %1362
    %1364 = vmax.xlane.f32.xlu0 %v1326
    %v1365 = vpop.xlane.xlu0 %1364
    %1366 = vmax.xlane.f32.xlu0 %v1327
    %v1367 = vpop.xlane.xlu0 %1366
    %1368 = vmax.xlane.f32.xlu0 %v1328
    %v1369 = vpop.xlane.xlu0 %1368
    %1370 = vmax.xlane.f32.xlu0 %v1329
    %v1371 = vpop.xlane.xlu0 %1370
    %1372 = vmax.xlane.f32.xlu0 %v1330
    %v1373 = vpop.xlane.xlu0 %1372
    %1374 = vmax.xlane.f32.xlu0 %v1331
    %v1375 = vpop.xlane.xlu0 %1374
    %1376 = vmax.xlane.f32.xlu0 %v1332
    %v1377 = vpop.xlane.xlu0 %1376
    %1378 = vmax.xlane.f32.xlu0 %v1333
    %v1379 = vpop.xlane.xlu0 %1378
    %1380 = vmax.xlane.f32.xlu0 %v1334
    %v1381 = vpop.xlane.xlu0 %1380
    %1382 = vmax.xlane.f32.xlu0 %v1335
    %v1383 = vpop.xlane.xlu0 %1382
    %1384 = vmax.xlane.f32.xlu0 %v1336
    %v1385 = vpop.xlane.xlu0 %1384
    %1386 = vmax.xlane.f32.xlu0 %v1337
    %v1387 = vpop.xlane.xlu0 %1386
    %1388 = vmax.xlane.f32.xlu0 %v1338
    %v1389 = vpop.xlane.xlu0 %1388
    %1390 = vmax.xlane.f32.xlu0 %v1339
    %v1391 = vpop.xlane.xlu0 %1390
    %1392 = vmax.xlane.f32.xlu0 %v1340
    %v1393 = vpop.xlane.xlu0 %1392
    %1394 = vmax.xlane.f32.xlu0 %v1341
    %v1395 = vpop.xlane.xlu0 %1394
    %1396 = vmax.xlane.f32.xlu0 %v1342
    %v1397 = vpop.xlane.xlu0 %1396
    %1398 = vmax.xlane.f32.xlu0 %v1343
    %v1399 = vpop.xlane.xlu0 %1398
    %1400 = vmax.xlane.f32.xlu0 %v1344
    %v1401 = vpop.xlane.xlu0 %1400
    %1402 = vmax.xlane.f32.xlu0 %v1345
    %v1403 = vpop.xlane.xlu0 %1402
    %1404 = vmax.xlane.f32.xlu0 %v1346
    %v1405 = vpop.xlane.xlu0 %1404
    %1406 = vmax.xlane.f32.xlu0 %v1347
    %v1407 = vpop.xlane.xlu0 %1406
    %1408 = vmax.xlane.f32.xlu0 %v1348
    %v1409 = vpop.xlane.xlu0 %1408
    %1410 = vmax.xlane.f32.xlu0 %v1349
    %v1411 = vpop.xlane.xlu0 %1410
    %1412 = vmax.xlane.f32.xlu0 %v1350
    %v1413 = vpop.xlane.xlu0 %1412
    %1414 = vmax.xlane.f32.xlu0 %v1351
    %v1415 = vpop.xlane.xlu0 %1414
    %v1416 = vsub.f32 %v1320, %v1353
    %v1417 = vsub.f32 %v1321, %v1355
    %v1418 = vsub.f32 %v1322, %v1357
    %v1419 = vsub.f32 %v1323, %v1359
    %v1420 = vsub.f32 %v1324, %v1361
    %v1421 = vsub.f32 %v1325, %v1363
    %v1422 = vsub.f32 %v1326, %v1365
    %v1423 = vsub.f32 %v1327, %v1367
    %v1424 = vsub.f32 %v1328, %v1369
    %v1425 = vsub.f32 %v1329, %v1371
    %v1426 = vsub.f32 %v1330, %v1373
    %v1427 = vsub.f32 %v1331, %v1375
    %v1428 = vsub.f32 %v1332, %v1377
    %v1429 = vsub.f32 %v1333, %v1379
    %v1430 = vsub.f32 %v1334, %v1381
    %v1431 = vsub.f32 %v1335, %v1383
    %v1432 = vsub.f32 %v1336, %v1385
    %v1433 = vsub.f32 %v1337, %v1387
    %v1434 = vsub.f32 %v1338, %v1389
    %v1435 = vsub.f32 %v1339, %v1391
    %v1436 = vsub.f32 %v1340, %v1393
    %v1437 = vsub.f32 %v1341, %v1395
    %v1438 = vsub.f32 %v1342, %v1397
    %v1439 = vsub.f32 %v1343, %v1399
    %v1440 = vsub.f32 %v1344, %v1401
    %v1441 = vsub.f32 %v1345, %v1403
    %v1442 = vsub.f32 %v1346, %v1405
    %v1443 = vsub.f32 %v1347, %v1407
    %v1444 = vsub.f32 %v1348, %v1409
    %v1445 = vsub.f32 %v1349, %v1411
    %v1446 = vsub.f32 %v1350, %v1413
    %v1447 = vsub.f32 %v1351, %v1415
    %v1448 = vmul.f32 %v1416, 1.442695
    %v1449 = vpow.pop %v1448
    %v1450 = vmul.f32 %v1417, 1.442695
    %v1451 = vpow.pop %v1450
    %v1452 = vmul.f32 %v1418, 1.442695
    %v1453 = vpow.pop %v1452
    %v1454 = vmul.f32 %v1419, 1.442695
    %v1455 = vpow.pop %v1454
    %v1456 = vmul.f32 %v1420, 1.442695
    %v1457 = vpow.pop %v1456
    %v1458 = vmul.f32 %v1421, 1.442695
    %v1459 = vpow.pop %v1458
    %v1460 = vmul.f32 %v1422, 1.442695
    %v1461 = vpow.pop %v1460
    %v1462 = vmul.f32 %v1423, 1.442695
    %v1463 = vpow.pop %v1462
    %v1464 = vmul.f32 %v1424, 1.442695
    %v1465 = vpow.pop %v1464
    %v1466 = vmul.f32 %v1425, 1.442695
    %v1467 = vpow.pop %v1466
    %v1468 = vmul.f32 %v1426, 1.442695
    %v1469 = vpow.pop %v1468
    %v1470 = vmul.f32 %v1427, 1.442695
    %v1471 = vpow.pop %v1470
    %v1472 = vmul.f32 %v1428, 1.442695
    %v1473 = vpow.pop %v1472
    %v1474 = vmul.f32 %v1429, 1.442695
    %v1475 = vpow.pop %v1474
    %v1476 = vmul.f32 %v1430, 1.442695
    %v1477 = vpow.pop %v1476
    %v1478 = vmul.f32 %v1431, 1.442695
    %v1479 = vpow.pop %v1478
    %v1480 = vmul.f32 %v1432, 1.442695
    %v1481 = vpow.pop %v1480
    %v1482 = vmul.f32 %v1433, 1.442695
    %v1483 = vpow.pop %v1482
    %v1484 = vmul.f32 %v1434, 1.442695
    %v1485 = vpow.pop %v1484
    %v1486 = vmul.f32 %v1435, 1.442695
    %v1487 = vpow.pop %v1486
    %v1488 = vmul.f32 %v1436, 1.442695
    %v1489 = vpow.pop %v1488
    %v1490 = vmul.f32 %v1437, 1.442695
    %v1491 = vpow.pop %v1490
    %v1492 = vmul.f32 %v1438, 1.442695
    %v1493 = vpow.pop %v1492
    %v1494 = vmul.f32 %v1439, 1.442695
    %v1495 = vpow.pop %v1494
    %v1496 = vmul.f32 %v1440, 1.442695
    %v1497 = vpow.pop %v1496
    %v1498 = vmul.f32 %v1441, 1.442695
    %v1499 = vpow.pop %v1498
    %v1500 = vmul.f32 %v1442, 1.442695
    %v1501 = vpow.pop %v1500
    %v1502 = vmul.f32 %v1443, 1.442695
    %v1503 = vpow.pop %v1502
    %v1504 = vmul.f32 %v1444, 1.442695
    %v1505 = vpow.pop %v1504
    %v1506 = vmul.f32 %v1445, 1.442695
    %v1507 = vpow.pop %v1506
    %v1508 = vmul.f32 %v1446, 1.442695
    %v1509 = vpow.pop %v1508
    %v1510 = vmul.f32 %v1447, 1.442695
    %v1511 = vpow.pop %v1510
    %1512 = vadd.xlane.f32.xlu0 %v1449
    %v1513 = vpop.xlane.xlu0 %1512
    %1514 = vadd.xlane.f32.xlu0 %v1451
    %v1515 = vpop.xlane.xlu0 %1514
    %1516 = vadd.xlane.f32.xlu0 %v1453
    %v1517 = vpop.xlane.xlu0 %1516
    %1518 = vadd.xlane.f32.xlu0 %v1455
    %v1519 = vpop.xlane.xlu0 %1518
    %1520 = vadd.xlane.f32.xlu0 %v1457
    %v1521 = vpop.xlane.xlu0 %1520
    %1522 = vadd.xlane.f32.xlu0 %v1459
    %v1523 = vpop.xlane.xlu0 %1522
    %1524 = vadd.xlane.f32.xlu0 %v1461
    %v1525 = vpop.xlane.xlu0 %1524
    %1526 = vadd.xlane.f32.xlu0 %v1463
    %v1527 = vpop.xlane.xlu0 %1526
    %1528 = vadd.xlane.f32.xlu0 %v1465
    %v1529 = vpop.xlane.xlu0 %1528
    %1530 = vadd.xlane.f32.xlu0 %v1467
    %v1531 = vpop.xlane.xlu0 %1530
    %1532 = vadd.xlane.f32.xlu0 %v1469
    %v1533 = vpop.xlane.xlu0 %1532
    %1534 = vadd.xlane.f32.xlu0 %v1471
    %v1535 = vpop.xlane.xlu0 %1534
    %1536 = vadd.xlane.f32.xlu0 %v1473
    %v1537 = vpop.xlane.xlu0 %1536
    %1538 = vadd.xlane.f32.xlu0 %v1475
    %v1539 = vpop.xlane.xlu0 %1538
    %1540 = vadd.xlane.f32.xlu0 %v1477
    %v1541 = vpop.xlane.xlu0 %1540
    %1542 = vadd.xlane.f32.xlu0 %v1479
    %v1543 = vpop.xlane.xlu0 %1542
    %1544 = vadd.xlane.f32.xlu0 %v1481
    %v1545 = vpop.xlane.xlu0 %1544
    %1546 = vadd.xlane.f32.xlu0 %v1483
    %v1547 = vpop.xlane.xlu0 %1546
    %1548 = vadd.xlane.f32.xlu0 %v1485
    %v1549 = vpop.xlane.xlu0 %1548
    %1550 = vadd.xlane.f32.xlu0 %v1487
    %v1551 = vpop.xlane.xlu0 %1550
    %1552 = vadd.xlane.f32.xlu0 %v1489
    %v1553 = vpop.xlane.xlu0 %1552
    %1554 = vadd.xlane.f32.xlu0 %v1491
    %v1555 = vpop.xlane.xlu0 %1554
    %1556 = vadd.xlane.f32.xlu0 %v1493
    %v1557 = vpop.xlane.xlu0 %1556
    %1558 = vadd.xlane.f32.xlu0 %v1495
    %v1559 = vpop.xlane.xlu0 %1558
    %1560 = vadd.xlane.f32.xlu0 %v1497
    %v1561 = vpop.xlane.xlu0 %1560
    %1562 = vadd.xlane.f32.xlu0 %v1499
    %v1563 = vpop.xlane.xlu0 %1562
    %1564 = vadd.xlane.f32.xlu0 %v1501
    %v1565 = vpop.xlane.xlu0 %1564
    %1566 = vadd.xlane.f32.xlu0 %v1503
    %v1567 = vpop.xlane.xlu0 %1566
    %1568 = vadd.xlane.f32.xlu0 %v1505
    %v1569 = vpop.xlane.xlu0 %1568
    %1570 = vadd.xlane.f32.xlu0 %v1507
    %v1571 = vpop.xlane.xlu0 %1570
    %1572 = vadd.xlane.f32.xlu0 %v1509
    %v1573 = vpop.xlane.xlu0 %1572
    %1574 = vadd.xlane.f32.xlu0 %v1511
    %v1575 = vpop.xlane.xlu0 %1574
    %v1576 = vrcp.pop %v1513
    %v1577 = vrcp.pop %v1515
    %v1578 = vrcp.pop %v1517
    %v1579 = vrcp.pop %v1519
    %v1580 = vrcp.pop %v1521
    %v1581 = vrcp.pop %v1523
    %v1582 = vrcp.pop %v1525
    %v1583 = vrcp.pop %v1527
    %v1584 = vrcp.pop %v1529
    %v1585 = vrcp.pop %v1531
    %v1586 = vrcp.pop %v1533
    %v1587 = vrcp.pop %v1535
    %v1588 = vrcp.pop %v1537
    %v1589 = vrcp.pop %v1539
    %v1590 = vrcp.pop %v1541
    %v1591 = vrcp.pop %v1543
    %v1592 = vrcp.pop %v1545
    %v1593 = vrcp.pop %v1547
    %v1594 = vrcp.pop %v1549
    %v1595 = vrcp.pop %v1551
    %v1596 = vrcp.pop %v1553
    %v1597 = vrcp.pop %v1555
    %v1598 = vrcp.pop %v1557
    %v1599 = vrcp.pop %v1559
    %v1600 = vrcp.pop %v1561
    %v1601 = vrcp.pop %v1563
    %v1602 = vrcp.pop %v1565
    %v1603 = vrcp.pop %v1567
    %v1604 = vrcp.pop %v1569
    %v1605 = vrcp.pop %v1571
    %v1606 = vrcp.pop %v1573
    %v1607 = vrcp.pop %v1575
    %v1608 = vmul.f32 %v1513, %v1576
    %v1609 = vmul.f32 %v1515, %v1577
    %v1610 = vmul.f32 %v1517, %v1578
    %v1611 = vmul.f32 %v1519, %v1579
    %v1612 = vmul.f32 %v1521, %v1580
    %v1613 = vmul.f32 %v1523, %v1581
    %v1614 = vmul.f32 %v1525, %v1582
    %v1615 = vmul.f32 %v1527, %v1583
    %v1616 = vmul.f32 %v1529, %v1584
    %v1617 = vmul.f32 %v1531, %v1585
    %v1618 = vmul.f32 %v1533, %v1586
    %v1619 = vmul.f32 %v1535, %v1587
    %v1620 = vmul.f32 %v1537, %v1588
    %v1621 = vmul.f32 %v1539, %v1589
    %v1622 = vmul.f32 %v1541, %v1590
    %v1623 = vmul.f32 %v1543, %v1591
    %v1624 = vmul.f32 %v1545, %v1592
    %v1625 = vmul.f32 %v1547, %v1593
    %v1626 = vmul.f32 %v1549, %v1594
    %v1627 = vmul.f32 %v1551, %v1595
    %v1628 = vmul.f32 %v1553, %v1596
    %v1629 = vmul.f32 %v1555, %v1597
    %v1630 = vmul.f32 %v1557, %v1598
    %v1631 = vmul.f32 %v1559, %v1599
    %v1632 = vmul.f32 %v1561, %v1600
    %v1633 = vmul.f32 %v1563, %v1601
    %v1634 = vmul.f32 %v1565, %v1602
    %v1635 = vmul.f32 %v1567, %v1603
    %v1636 = vmul.f32 %v1569, %v1604
    %v1637 = vmul.f32 %v1571, %v1605
    %v1638 = vmul.f32 %v1573, %v1606
    %v1639 = vmul.f32 %v1575, %v1607
    %v1640 = vsub.f32 2.0, %v1608
    %v1641 = vsub.f32 2.0, %v1609
    %v1642 = vsub.f32 2.0, %v1610
    %v1643 = vsub.f32 2.0, %v1611
    %v1644 = vsub.f32 2.0, %v1612
    %v1645 = vsub.f32 2.0, %v1613
    %v1646 = vsub.f32 2.0, %v1614
    %v1647 = vsub.f32 2.0, %v1615
    %v1648 = vsub.f32 2.0, %v1616
    %v1649 = vsub.f32 2.0, %v1617
    %v1650 = vsub.f32 2.0, %v1618
    %v1651 = vsub.f32 2.0, %v1619
    %v1652 = vsub.f32 2.0, %v1620
    %v1653 = vsub.f32 2.0, %v1621
    %v1654 = vsub.f32 2.0, %v1622
    %v1655 = vsub.f32 2.0, %v1623
    %v1656 = vsub.f32 2.0, %v1624
    %v1657 = vsub.f32 2.0, %v1625
    %v1658 = vsub.f32 2.0, %v1626
    %v1659 = vsub.f32 2.0, %v1627
    %v1660 = vsub.f32 2.0, %v1628
    %v1661 = vsub.f32 2.0, %v1629
    %v1662 = vsub.f32 2.0, %v1630
    %v1663 = vsub.f32 2.0, %v1631
    %v1664 = vsub.f32 2.0, %v1632
    %v1665 = vsub.f32 2.0, %v1633
    %v1666 = vsub.f32 2.0, %v1634
    %v1667 = vsub.f32 2.0, %v1635
    %v1668 = vsub.f32 2.0, %v1636
    %v1669 = vsub.f32 2.0, %v1637
    %v1670 = vsub.f32 2.0, %v1638
    %v1671 = vsub.f32 2.0, %v1639
    %v1672 = vmul.f32 %v1576, %v1640
    %v1673 = vmul.f32 %v1577, %v1641
    %v1674 = vmul.f32 %v1578, %v1642
    %v1675 = vmul.f32 %v1579, %v1643
    %v1676 = vmul.f32 %v1580, %v1644
    %v1677 = vmul.f32 %v1581, %v1645
    %v1678 = vmul.f32 %v1582, %v1646
    %v1679 = vmul.f32 %v1583, %v1647
    %v1680 = vmul.f32 %v1584, %v1648
    %v1681 = vmul.f32 %v1585, %v1649
    %v1682 = vmul.f32 %v1586, %v1650
    %v1683 = vmul.f32 %v1587, %v1651
    %v1684 = vmul.f32 %v1588, %v1652
    %v1685 = vmul.f32 %v1589, %v1653
    %v1686 = vmul.f32 %v1590, %v1654
    %v1687 = vmul.f32 %v1591, %v1655
    %v1688 = vmul.f32 %v1592, %v1656
    %v1689 = vmul.f32 %v1593, %v1657
    %v1690 = vmul.f32 %v1594, %v1658
    %v1691 = vmul.f32 %v1595, %v1659
    %v1692 = vmul.f32 %v1596, %v1660
    %v1693 = vmul.f32 %v1597, %v1661
    %v1694 = vmul.f32 %v1598, %v1662
    %v1695 = vmul.f32 %v1599, %v1663
    %v1696 = vmul.f32 %v1600, %v1664
    %v1697 = vmul.f32 %v1601, %v1665
    %v1698 = vmul.f32 %v1602, %v1666
    %v1699 = vmul.f32 %v1603, %v1667
    %v1700 = vmul.f32 %v1604, %v1668
    %v1701 = vmul.f32 %v1605, %v1669
    %v1702 = vmul.f32 %v1606, %v1670
    %v1703 = vmul.f32 %v1607, %v1671
    %v1704 = vmul.f32 %v1449, %v1672
    %v1705 = vmul.f32 %v1451, %v1673
    %v1706 = vmul.f32 %v1453, %v1674
    %v1707 = vmul.f32 %v1455, %v1675
    %v1708 = vmul.f32 %v1457, %v1676
    %v1709 = vmul.f32 %v1459, %v1677
    %v1710 = vmul.f32 %v1461, %v1678
    %v1711 = vmul.f32 %v1463, %v1679
    %v1712 = vmul.f32 %v1465, %v1680
    %v1713 = vmul.f32 %v1467, %v1681
    %v1714 = vmul.f32 %v1469, %v1682
    %v1715 = vmul.f32 %v1471, %v1683
    %v1716 = vmul.f32 %v1473, %v1684
    %v1717 = vmul.f32 %v1475, %v1685
    %v1718 = vmul.f32 %v1477, %v1686
    %v1719 = vmul.f32 %v1479, %v1687
    %v1720 = vmul.f32 %v1481, %v1688
    %v1721 = vmul.f32 %v1483, %v1689
    %v1722 = vmul.f32 %v1485, %v1690
    %v1723 = vmul.f32 %v1487, %v1691
    %v1724 = vmul.f32 %v1489, %v1692
    %v1725 = vmul.f32 %v1491, %v1693
    %v1726 = vmul.f32 %v1493, %v1694
    %v1727 = vmul.f32 %v1495, %v1695
    %v1728 = vmul.f32 %v1497, %v1696
    %v1729 = vmul.f32 %v1499, %v1697
    %v1730 = vmul.f32 %v1501, %v1698
    %v1731 = vmul.f32 %v1503, %v1699
    %v1732 = vmul.f32 %v1505, %v1700
    %v1733 = vmul.f32 %v1507, %v1701
    %v1734 = vmul.f32 %v1509, %v1702
    %v1735 = vmul.f32 %v1511, %v1703
    %vm1736 = vcmp.eq.s32.totalorder %v1318, 8
    %v1737 = vsel %vm1736, %v1191, 0.0
    %v1738 = vsel %vm1736, %v1194, 0.0
    %v1739 = vsel %vm1736, %v1199, 0.0
    %v1740 = vsel %vm1736, %v1202, 0.0
    %v1741 = vsel %vm1736, %v1207, 0.0
    %v1742 = vsel %vm1736, %v1210, 0.0
    %v1743 = vsel %vm1736, %v1215, 0.0
    %v1744 = vsel %vm1736, %v1218, 0.0
    %v1745 = vsel %vm1736, %v1223, 0.0
    %v1746 = vsel %vm1736, %v1226, 0.0
    %v1747 = vsel %vm1736, %v1231, 0.0
    %v1748 = vsel %vm1736, %v1234, 0.0
    %v1749 = vsel %vm1736, %v1239, 0.0
    %v1750 = vsel %vm1736, %v1242, 0.0
    %v1751 = vsel %vm1736, %v1247, 0.0
    %v1752 = vsel %vm1736, %v1250, 0.0
    %v1753 = vsel %vm1736, %v1255, 0.0
    %v1754 = vsel %vm1736, %v1258, 0.0
    %v1755 = vsel %vm1736, %v1263, 0.0
    %v1756 = vsel %vm1736, %v1266, 0.0
    %v1757 = vsel %vm1736, %v1271, 0.0
    %v1758 = vsel %vm1736, %v1274, 0.0
    %v1759 = vsel %vm1736, %v1279, 0.0
    %v1760 = vsel %vm1736, %v1282, 0.0
    %v1761 = vsel %vm1736, %v1287, 0.0
    %v1762 = vsel %vm1736, %v1290, 0.0
    %v1763 = vsel %vm1736, %v1295, 0.0
    %v1764 = vsel %vm1736, %v1298, 0.0
    %v1765 = vsel %vm1736, %v1303, 0.0
    %v1766 = vsel %vm1736, %v1306, 0.0
    %v1767 = vsel %vm1736, %v1311, 0.0
    %v1768 = vsel %vm1736, %v1314, 0.0
    %v1769 = vadd.f32 %v1704, %v1737
    %v1770 = vadd.f32 %v1705, %v1738
    %v1771 = vadd.f32 %v1706, %v1739
    %v1772 = vadd.f32 %v1707, %v1740
    %v1773 = vadd.f32 %v1708, %v1741
    %v1774 = vadd.f32 %v1709, %v1742
    %v1775 = vadd.f32 %v1710, %v1743
    %v1776 = vadd.f32 %v1711, %v1744
    %v1777 = vadd.f32 %v1712, %v1745
    %v1778 = vadd.f32 %v1713, %v1746
    %v1779 = vadd.f32 %v1714, %v1747
    %v1780 = vadd.f32 %v1715, %v1748
    %v1781 = vadd.f32 %v1716, %v1749
    %v1782 = vadd.f32 %v1717, %v1750
    %v1783 = vadd.f32 %v1718, %v1751
    %v1784 = vadd.f32 %v1719, %v1752
    %v1785 = vadd.f32 %v1720, %v1753
    %v1786 = vadd.f32 %v1721, %v1754
    %v1787 = vadd.f32 %v1722, %v1755
    %v1788 = vadd.f32 %v1723, %v1756
    %v1789 = vadd.f32 %v1724, %v1757
    %v1790 = vadd.f32 %v1725, %v1758
    %v1791 = vadd.f32 %v1726, %v1759
    %v1792 = vadd.f32 %v1727, %v1760
    %v1793 = vadd.f32 %v1728, %v1761
    %v1794 = vadd.f32 %v1729, %v1762
    %v1795 = vadd.f32 %v1730, %v1763
    %v1796 = vadd.f32 %v1731, %v1764
    %v1797 = vadd.f32 %v1732, %v1765
    %v1798 = vadd.f32 %v1733, %v1766
    %v1799 = vadd.f32 %v1734, %v1767
    %v1800 = vadd.f32 %v1735, %v1768
    %1801 = vst [vmem:[#allocation10] sm:$0xff] %v1769
    %1802 = vst [vmem:[#allocation10 + $0x8] sm:$0xff] %v1770
    %1803 = vst [vmem:[#allocation10 + $0x10] sm:$0xff] %v1771
    %1804 = vst [vmem:[#allocation10 + $0x18] sm:$0xff] %v1772
    %1805 = vst [vmem:[#allocation10 + $0x20] sm:$0xff] %v1773
    %1806 = vst [vmem:[#allocation10 + $0x28] sm:$0xff] %v1774
    %1807 = vst [vmem:[#allocation10 + $0x30] sm:$0xff] %v1775
    %1808 = vst [vmem:[#allocation10 + $0x38] sm:$0xff] %v1776
    %1809 = vst [vmem:[#allocation10 + $0x40] sm:$0xff] %v1777
    %1810 = vst [vmem:[#allocation10 + $0x48] sm:$0xff] %v1778
    %1811 = vst [vmem:[#allocation10 + $0x50] sm:$0xff] %v1779
    %1812 = vst [vmem:[#allocation10 + $0x58] sm:$0xff] %v1780
    %1813 = vst [vmem:[#allocation10 + $0x60] sm:$0xff] %v1781
    %1814 = vst [vmem:[#allocation10 + $0x68] sm:$0xff] %v1782
    %1815 = vst [vmem:[#allocation10 + $0x70] sm:$0xff] %v1783
    %1816 = vst [vmem:[#allocation10 + $0x78] sm:$0xff] %v1784
    %1817 = vst [vmem:[#allocation10 + $0x80] sm:$0xff] %v1785
    %1818 = vst [vmem:[#allocation10 + $0x88] sm:$0xff] %v1786
    %1819 = vst [vmem:[#allocation10 + $0x90] sm:$0xff] %v1787
    %1820 = vst [vmem:[#allocation10 + $0x98] sm:$0xff] %v1788
    %1821 = vst [vmem:[#allocation10 + $0xa0] sm:$0xff] %v1789
    %1822 = vst [vmem:[#allocation10 + $0xa8] sm:$0xff] %v1790
    %1823 = vst [vmem:[#allocation10 + $0xb0] sm:$0xff] %v1791
    %1824 = vst [vmem:[#allocation10 + $0xb8] sm:$0xff] %v1792
    %1825 = vst [vmem:[#allocation10 + $0xc0] sm:$0xff] %v1793
    %1826 = vst [vmem:[#allocation10 + $0xc8] sm:$0xff] %v1794
    %1827 = vst [vmem:[#allocation10 + $0xd0] sm:$0xff] %v1795
    %1828 = vst [vmem:[#allocation10 + $0xd8] sm:$0xff] %v1796
    %1829 = vst [vmem:[#allocation10 + $0xe0] sm:$0xff] %v1797
    %1830 = vst [vmem:[#allocation10 + $0xe8] sm:$0xff] %v1798
    %1831 = vst [vmem:[#allocation10 + $0xf0] sm:$0xff] %v1799
    %1832 = vst [vmem:[#allocation10 + $0xf8] sm:$0xff] %v1800
    // Predicated region
    $region46: #{tpu_custom_call.1} parent=1 // pred_check
      _
    $region47: #{tpu_custom_call.1} parent=1 // pred_check_branch
      %1834 = sbr.rel (0) target = $region49
    $region48: #{tpu_custom_call.1} parent=1 // pred_region
      %s1836 = ssub.s32 4096, 4096
      %1837 = vsyncadd [#allocation4], %s1836
      %s1838 = sshll.u32 [#allocation10], 4
      %s1839 = int_to_ptr.vmem [resolvable:$true] %s1838
      %1844 = dma.vmem_to_hbm [thread:$0]  %s1839, 4096, %s7, [#allocation4], 128, 128, 8
    $region49: #{tpu_custom_call.1} parent=1 // pred_fallthru
      _
    // Predicated region
    $region50: #{tpu_custom_call.1} parent=1 // pred_check
      _
    $region51: #{tpu_custom_call.1} parent=1 // pred_check_branch
      %1846 = sbr.rel (0) target = $region53
    $region52: #{tpu_custom_call.1} parent=1 // pred_region
      %1847 = dma.done [#allocation4], 4096
    $region53: #{tpu_custom_call.1} parent=1 // pred_fallthru
      _
    %1848 = vsyncpa [#allocation3], 1
    %1849 = vsyncpa [#allocation6], 1
    %1850 = vsyncpa [#allocation9], 1
    %1851 = vsyncpa [#allocation4], 1

</llo_original>
